<compile_context>
chip_gen: v5e
topology: v5e:2x2
jax: 0.10.0
libtpu: 0.0.40
codegen_flags: <defaults>
</compile_context>

<pallas_src>
import functools
import math

import jax
import jax.numpy as jnp
from jax.experimental import pallas as pl
from jax.experimental.pallas import tpu as pltpu

# Scoped-VMEM cap: under v7x's 64 MiB physical VMEM, above the 16/32 MiB
# defaults so the 512-wide tiles can double-buffer on every generation.
VMEM_LIMIT = 48 * 1024 * 1024

# Dense matmul tiles.  Budget per kernel at 512^3 tiles:
#   acc (512x512 f32) + 2x A + 2x W + 2x out (bf16) ~= 4 MiB  -> fits v7x.
TM, TN, TK = 512, 512, 512
# Flash-attention tiles (q rows / kv columns streamed per grid step).
TQ, TKV = 512, 512


def _tile(dim, target, align):
    """Largest tile <= target that divides `dim` and is a multiple of `align`.
    Falls back to dim/2 (if it aligns) so large dims keep >=2 tiles for the
    v7x megacore split, else the full dimension."""
    if dim <= target:
        return dim
    t = (target // align) * align
    while t >= align:
        if dim % t == 0:
            return t
        t -= align
    if dim % 2 == 0 and (dim // 2) % align == 0:
        return dim // 2
    return dim


# ----------------------------- Pallas kernels ------------------------------

def _dense_kernel(x_ref, w_ref, b_ref, o_ref, acc_ref, *, activation):
    """Tiled matmul: out = act(x @ w + b).  grid = (M-tiles, N-tiles, K-tiles)."""
    k = pl.program_id(2)

    @pl.when(k == 0)
    def _():
        acc_ref[...] = jnp.zeros_like(acc_ref)

    acc_ref[...] += jnp.dot(x_ref[...], w_ref[...],
                            preferred_element_type=jnp.float32)

    @pl.when(k == pl.num_programs(2) - 1)
    def _():
        y = acc_ref[...] + b_ref[...].astype(jnp.float32)
        if activation == "gelu":
            # TODO(synk): HF BERT uses exact erf-GELU; tanh approximation used
            # here (erf has no guaranteed Mosaic lowering) -> tiny numeric drift.
            y = jax.nn.gelu(y, approximate=True)
        o_ref[...] = y.astype(o_ref.dtype)


def _dense_ln_kernel(x_ref, w_ref, b_ref, *rest, eps, has_residual, valid_n):
    """Tiled matmul fused with (optional residual add) + LayerNorm epilogue.

    grid = (M-tiles, K-tiles); N is kept whole so the LayerNorm reduction over
    the feature axis runs on the f32 accumulator at the last K step.
    `valid_n` masks the stats to the first `valid_n` columns (padded head).
    """
    if has_residual:
        r_ref, g_ref, bn_ref, o_ref, acc_ref = rest
    else:
        g_ref, bn_ref, o_ref, acc_ref = rest

    k = pl.program_id(1)

    @pl.when(k == 0)
    def _():
        acc_ref[...] = jnp.zeros_like(acc_ref)

    acc_ref[...] += jnp.dot(x_ref[...], w_ref[...],
                            preferred_element_type=jnp.float32)

    @pl.when(k == pl.num_programs(1) - 1)
    def _():
        y = acc_ref[...] + b_ref[...].astype(jnp.float32)
        if has_residual:
            y = y + r_ref[...].astype(jnp.float32)
        n = y.shape[-1]
        if valid_n is not None and valid_n < n:
            col = jax.lax.broadcasted_iota(jnp.int32, y.shape, 1)
            y = jnp.where(col < valid_n, y, 0.0)
            denom = float(valid_n)
        else:
            denom = float(n)
        # one-pass stats: E[y^2] - mean^2  (saves a full (tm, N) f32 sweep)
        mean = jnp.sum(y, axis=-1, keepdims=True) / denom
        var = jnp.maximum(jnp.sum(y * y, axis=-1, keepdims=True) / denom
                          - mean * mean, 0.0)
        yn = (y - mean) * jax.lax.rsqrt(var + eps)
        o_ref[...] = (yn * g_ref[...].astype(jnp.float32)
                      + bn_ref[...].astype(jnp.float32)).astype(o_ref.dtype)


def _layernorm_kernel(x_ref, g_ref, b_ref, o_ref, *, eps):
    x = x_ref[...].astype(jnp.float32)
    denom = float(x.shape[-1])
    mean = jnp.sum(x, axis=-1, keepdims=True) / denom
    var = jnp.maximum(jnp.sum(x * x, axis=-1, keepdims=True) / denom
                      - mean * mean, 0.0)
    y = (x - mean) * jax.lax.rsqrt(var + eps)
    o_ref[...] = (y * g_ref[...].astype(jnp.float32)
                  + b_ref[...].astype(jnp.float32)).astype(o_ref.dtype)


def _flash_attn_kernel(q_ref, kt_ref, v_ref, m_ref, o_ref,
                       m_sc, l_sc, acc_sc, *, scale):
    """Flash attention, one (batch, head, q-tile) per (b, h, qi); KV streamed
    over the last grid axis with online softmax.

    q_ref : (1, 1, tq, dh)  bf16
    kt_ref: (1, 1, dh, tkv) bf16  (K pre-transposed -> no in-kernel XLU transpose)
    v_ref : (1, 1, tkv, dh) bf16
    m_ref : (1, 1, tkv)     f32   additive mask bias
    o_ref : (1, 1, tq, dh)
    """
    ki = pl.program_id(3)

    @pl.when(ki == 0)
    def _():
        m_sc[...] = jnp.full_like(m_sc[...], -jnp.inf)
        l_sc[...] = jnp.zeros_like(l_sc[...])
        acc_sc[...] = jnp.zeros_like(acc_sc[...])

    q = q_ref[0, 0]                                           # (tq, dh)
    kt = kt_ref[0, 0]                                         # (dh, tkv)
    v = v_ref[0, 0]                                           # (tkv, dh)
    bias = m_ref[0]                                           # (1, tkv) f32

    s = jnp.dot(q, kt, preferred_element_type=jnp.float32) * scale + bias
    m_prev = m_sc[...]
    m_new = jnp.maximum(m_prev, jnp.max(s, axis=-1, keepdims=True))
    alpha = jnp.exp(m_prev - m_new)
    p = jnp.exp(s - m_new)
    l_sc[...] = alpha * l_sc[...] + jnp.sum(p, axis=-1, keepdims=True)
    acc_sc[...] = alpha * acc_sc[...] + jnp.dot(
        p.astype(v.dtype), v, preferred_element_type=jnp.float32)
    m_sc[...] = m_new

    @pl.when(ki == pl.num_programs(3) - 1)
    def _():
        # exact division (not approx reciprocal) so softmax matches reference
        o_ref[0, 0] = (acc_sc[...] / l_sc[...]).astype(o_ref.dtype)


# ----------------------------- Pallas wrappers ------------------------------

def dense(x, w, b, *, activation=None, out_dtype=jnp.bfloat16,
          tm=TM, tn=TN, tk=TK):
    M, K = x.shape
    _, N = w.shape
    tm = _tile(M, tm, 16)     # bf16 sublane packing -> align 16
    tn = _tile(N, tn, 128)
    tk = _tile(K, tk, 128)
    grid = (M // tm, N // tn, K // tk)
    cost = pl.CostEstimate(
        flops=2 * M * N * K,
        transcendentals=(M * N if activation == "gelu" else 0),
        bytes_accessed=(M * K + K * N) * x.dtype.itemsize
                       + M * N * jnp.dtype(out_dtype).itemsize)
    # TODO(synk): if the (k, j) weight fetch is still exposed at these tile
    # sizes, sweep pipeline_mode=pl.Buffered(3) on the weight BlockSpec.
    return pl.pallas_call(
        functools.partial(_dense_kernel, activation=activation),
        out_shape=jax.ShapeDtypeStruct((M, N), out_dtype),
        grid=grid,
        in_specs=[pl.BlockSpec((tm, tk), lambda i, j, k: (i, k)),
                  pl.BlockSpec((tk, tn), lambda i, j, k: (k, j)),
                  pl.BlockSpec((1, tn), lambda i, j, k: (0, j))],
        out_specs=pl.BlockSpec((tm, tn), lambda i, j, k: (i, j)),
        scratch_shapes=[pltpu.VMEM((tm, tn), jnp.float32)],
        compiler_params=pltpu.CompilerParams(
            dimension_semantics=("parallel", "parallel", "arbitrary"),
            vmem_limit_bytes=VMEM_LIMIT),
        cost_estimate=cost,
    )(x, w, b.reshape(1, N))


def dense_ln(x, w, b, gamma, beta, residual=None, *, eps, valid_n=None,
             out_dtype=jnp.bfloat16, tm=TM, tk=TK):
    """Fused  LayerNorm(x @ w + b [+ residual])  with N kept whole."""
    M, K = x.shape
    _, N = w.shape
    tm = _tile(M, tm, 16)
    tk = _tile(K, tk, 128)
    grid = (M // tm, K // tk)
    has_res = residual is not None

    in_specs = [pl.BlockSpec((tm, tk), lambda i, k: (i, k)),
                pl.BlockSpec((tk, N), lambda i, k: (k, 0)),
                pl.BlockSpec((1, N), lambda i, k: (0, 0))]
    args = [x, w, b.reshape(1, N)]
    if has_res:
        # index does not change with k -> fetched once per M-tile
        in_specs.append(pl.BlockSpec((tm, N), lambda i, k: (i, 0)))
        args.append(residual)
    in_specs += [pl.BlockSpec((1, N), lambda i, k: (0, 0)),
                 pl.BlockSpec((1, N), lambda i, k: (0, 0))]
    args += [gamma.reshape(1, N), beta.reshape(1, N)]

    cost = pl.CostEstimate(
        flops=2 * M * N * K + 8 * M * N,
        transcendentals=M,
        bytes_accessed=(M * K + K * N + (M * N if has_res else 0)) * x.dtype.itemsize
                       + M * N * jnp.dtype(out_dtype).itemsize)
    return pl.pallas_call(
        functools.partial(_dense_ln_kernel, eps=eps, has_residual=has_res,
                          valid_n=valid_n),
        out_shape=jax.ShapeDtypeStruct((M, N), out_dtype),
        grid=grid,
        in_specs=in_specs,
        out_specs=pl.BlockSpec((tm, N), lambda i, k: (i, 0)),
        scratch_shapes=[pltpu.VMEM((tm, N), jnp.float32)],
        compiler_params=pltpu.CompilerParams(
            dimension_semantics=("parallel", "arbitrary"),
            vmem_limit_bytes=VMEM_LIMIT),
        cost_estimate=cost,
    )(*args)


def layernorm(x, gamma, beta, *, eps, out_dtype=jnp.bfloat16, tm=TM):
    M, N = x.shape
    tm = _tile(M, tm, 16)
    return pl.pallas_call(
        functools.partial(_layernorm_kernel, eps=eps),
        out_shape=jax.ShapeDtypeStruct((M, N), out_dtype),
        grid=(M // tm,),
        in_specs=[pl.BlockSpec((tm, N), lambda i: (i, 0)),
                  pl.BlockSpec((1, N), lambda i: (0, 0)),
                  pl.BlockSpec((1, N), lambda i: (0, 0))],
        out_specs=pl.BlockSpec((tm, N), lambda i: (i, 0)),
        compiler_params=pltpu.CompilerParams(
            dimension_semantics=("parallel",), vmem_limit_bytes=VMEM_LIMIT),
    )(x, gamma.reshape(1, N), beta.reshape(1, N))


def flash_attention(q, kt, v, mask_bias, *, scale, out_dtype=jnp.bfloat16,
                    tq=TQ, tkv=TKV):
    """q, v: (B, nh, S, dh);  kt: (B, nh, dh, S);  mask_bias: (B, 1, S) f32."""
    B, nh, S, dh = q.shape
    tq = _tile(S, tq, 16)
    tkv = _tile(S, tkv, 128)
    grid = (B, nh, S // tq, S // tkv)
    cost = pl.CostEstimate(
        flops=4 * B * nh * S * S * dh,
        transcendentals=B * nh * S * S,
        bytes_accessed=3 * B * nh * S * dh * q.dtype.itemsize
                       + B * S * 4
                       + B * nh * S * dh * jnp.dtype(out_dtype).itemsize)
    return pl.pallas_call(
        functools.partial(_flash_attn_kernel, scale=scale),
        out_shape=jax.ShapeDtypeStruct((B, nh, S, dh), out_dtype),
        grid=grid,
        in_specs=[
            pl.BlockSpec((1, 1, tq, dh), lambda b, h, qi, ki: (b, h, qi, 0)),
            pl.BlockSpec((1, 1, dh, tkv), lambda b, h, qi, ki: (b, h, 0, ki)),
            pl.BlockSpec((1, 1, tkv, dh), lambda b, h, qi, ki: (b, h, ki, 0)),
            pl.BlockSpec((1, 1, tkv), lambda b, h, qi, ki: (b, 0, ki)),
        ],
        out_specs=pl.BlockSpec((1, 1, tq, dh), lambda b, h, qi, ki: (b, h, qi, 0)),
        scratch_shapes=[pltpu.VMEM((tq, 1), jnp.float32),
                        pltpu.VMEM((tq, 1), jnp.float32),
                        pltpu.VMEM((tq, dh), jnp.float32)],
        compiler_params=pltpu.CompilerParams(
            dimension_semantics=("parallel", "parallel", "parallel", "arbitrary"),
            vmem_limit_bytes=VMEM_LIMIT),
        cost_estimate=cost,
    )(q, kt, v, mask_bias)


# --------------------------- model construction -----------------------------

def init_params(key, *, vocab, max_pos, H, nh, ffn, layers, nout):
    ks = iter(jax.random.split(key, 8 + 12 * layers))
    std = 0.02
    p = {
        "word_emb": jax.random.normal(next(ks), (vocab, H), jnp.float32) * std,
        "pos_emb": jax.random.normal(next(ks), (max_pos, H), jnp.float32) * std,
        "type_emb": jax.random.normal(next(ks), (2, H), jnp.float32) * std,
        "emb_ln_g": jnp.ones((H,), jnp.float32),
        "emb_ln_b": jnp.zeros((H,), jnp.float32),
        "head_w": jax.random.normal(next(ks), (H, nout), jnp.float32) * std,
        "head_b": jnp.zeros((nout,), jnp.float32),
        "head_ln_g": jnp.ones((nout,), jnp.float32),
        "head_ln_b": jnp.zeros((nout,), jnp.float32),
        "layers": [],
    }
    for _ in range(layers):
        lp = {
            "wq": jax.random.normal(next(ks), (H, H), jnp.float32) * std,
            "bq": jnp.zeros((H,), jnp.float32),
            "wk": jax.random.normal(next(ks), (H, H), jnp.float32) * std,
            "bk": jnp.zeros((H,), jnp.float32),
            "wv": jax.random.normal(next(ks), (H, H), jnp.float32) * std,
            "bv": jnp.zeros((H,), jnp.float32),
            "wo": jax.random.normal(next(ks), (H, H), jnp.float32) * std,
            "bo": jnp.zeros((H,), jnp.float32),
            "ln1_g": jnp.ones((H,), jnp.float32),
            "ln1_b": jnp.zeros((H,), jnp.float32),
            "wi": jax.random.normal(next(ks), (H, ffn), jnp.float32) * std,
            "bi": jnp.zeros((ffn,), jnp.float32),
            "wf": jax.random.normal(next(ks), (ffn, H), jnp.float32) * std,
            "bf": jnp.zeros((H,), jnp.float32),
            "ln2_g": jnp.ones((H,), jnp.float32),
            "ln2_b": jnp.zeros((H,), jnp.float32),
        }
        p["layers"].append(lp)
    return p


def prepare_params(p):
    """Inference layout: bf16 matmul weights, fused (H, 3H) QKV, and the
    classification head padded to a 128-lane output (lane-dense stores)."""
    bf16 = lambda w: w.astype(jnp.bfloat16)
    nout = p["head_w"].shape[1]
    n_pad = max(128, ((nout + 127) // 128) * 128)
    pad = n_pad - nout
    rp = {
        "word_emb": p["word_emb"], "pos_emb": p["pos_emb"], "type_emb": p["type_emb"],
        "emb_ln_g": p["emb_ln_g"], "emb_ln_b": p["emb_ln_b"],
        "head_w": bf16(jnp.pad(p["head_w"], ((0, 0), (0, pad)))),
        "head_b": jnp.pad(p["head_b"], (0, pad)),
        "head_ln_g": jnp.pad(p["head_ln_g"], (0, pad)),
        "head_ln_b": jnp.pad(p["head_ln_b"], (0, pad)),
        "layers": [],
    }
    for lp in p["layers"]:
        rp["layers"].append({
            "wqkv": bf16(jnp.concatenate([lp["wq"], lp["wk"], lp["wv"]], axis=1)),
            "bqkv": jnp.concatenate([lp["bq"], lp["bk"], lp["bv"]]),
            "wo": bf16(lp["wo"]), "bo": lp["bo"],
            "ln1_g": lp["ln1_g"], "ln1_b": lp["ln1_b"],
            "wi": bf16(lp["wi"]), "bi": lp["bi"],
            "wf": bf16(lp["wf"]), "bf": lp["bf"],
            "ln2_g": lp["ln2_g"], "ln2_b": lp["ln2_b"],
        })
    return rp


def bert_layer(x2, lp, mask_bias, *, B, S, H, nh, dh):
    # x2: (B*S, H) bf16
    qkv = dense(x2, lp["wqkv"], lp["bqkv"])                        # (B*S, 3H)
    # Head-major relayout (XLA glue): Q/V -> (B, nh, S, dh), K pre-transposed
    # -> (B, nh, dh, S) so every per-head block is a clean tile slab and the
    # score matmul needs no in-kernel transpose.
    qkv = qkv.reshape(B, S, 3, nh, dh)
    q = qkv[:, :, 0].transpose(0, 2, 1, 3)
    kt = qkv[:, :, 1].transpose(0, 2, 3, 1)
    v = qkv[:, :, 2].transpose(0, 2, 1, 3)
    ctx = flash_attention(q, kt, v, mask_bias, scale=1.0 / math.sqrt(dh))
    ctx = ctx.transpose(0, 2, 1, 3).reshape(B * S, H)              # merge heads
    # fused: wo-projection + bias + residual + LayerNorm
    x2 = dense_ln(ctx, lp["wo"], lp["bo"],
                  lp["ln1_g"], lp["ln1_b"], residual=x2, eps=1e-12)
    inter = dense(x2, lp["wi"], lp["bi"], activation="gelu")       # (B*S, FFN)
    # fused: wf-projection + bias + residual + LayerNorm
    x2 = dense_ln(inter, lp["wf"], lp["bf"],
                  lp["ln2_g"], lp["ln2_b"], residual=x2, eps=1e-12)
    return x2


def text_encoder_forward(params, input_ids, attention_mask, *, nh, nout):
    B, S = input_ids.shape
    H = params["word_emb"].shape[1]
    dh = H // nh

    # ---- embeddings (gathers are XLA glue; LayerNorm in Pallas) ----
    # TODO(synk): token_type_ids fixed to 0 (HF default when not provided).
    emb = (params["word_emb"][input_ids]
           + params["pos_emb"][jnp.arange(S)][None, :, :]
           + params["type_emb"][0][None, None, :])                 # (B, S, H) f32
    x2 = layernorm(emb.reshape(B * S, H), params["emb_ln_g"],
                   params["emb_ln_b"], eps=1e-12)                  # (B*S, H) bf16

    # ---- extended attention mask: (1 - mask) * -1e9, shape (B, 1, S) f32 ----
    mask_bias = ((1.0 - attention_mask.astype(jnp.float32)) * -1e9)[:, None, :]

    # ---- transformer encoder ----
    for lp in params["layers"]:
        x2 = bert_layer(x2, lp, mask_bias, B=B, S=S, H=H, nh=nh, dh=dh)

    # ---- CLS -> Linear(nout) -> LayerNorm(nout): fused Pallas head ----
    # Output padded to 128 lanes inside the kernel (stats masked to nout),
    # sliced back here.
    cls = x2.reshape(B, S, H)[:, 0, :]                             # (B, H) bf16
    out = dense_ln(cls, params["head_w"], params["head_b"],
                   params["head_ln_g"], params["head_ln_b"],
                   residual=None, eps=1e-5, valid_n=nout,
                   out_dtype=jnp.float32)
    return out[:, :nout]


# ---------------------------------- main -------------------------------------

if __name__ == "__main__":
    B, S, H, NH, FFN, LAYERS, NOUT, VOCAB, MAX_POS = 2, 8, 32, 4, 64, 2, 16, 50, 32

    key = jax.random.PRNGKey(0)
    pkey, ikey = jax.random.split(key)
    params = init_params(pkey, vocab=VOCAB, max_pos=MAX_POS, H=H, nh=NH,
                         ffn=FFN, layers=LAYERS, nout=NOUT)
    rparams = prepare_params(params)

    input_ids = jax.random.randint(ikey, (B, S), 0, VOCAB, dtype=jnp.int32)
    attention_mask = jnp.ones((B, S), jnp.int32).at[1, 6:].set(0)  # pad tail of seq 1

    forward = jax.jit(functools.partial(text_encoder_forward, nh=NH, nout=NOUT))
    out = jax.block_until_ready(forward(rparams, input_ids, attention_mask))

    assert out.shape == (B, NOUT) and out.dtype == jnp.float32
    assert bool(jnp.all(jnp.isfinite(out)))
    print("KERNEL_OK")
</pallas_src>

<mosaic_0001>
module attributes {stable_mosaic.version = 11 : i64} {
  func.func @_dense_kernel(%arg0: i32, %arg1: i32, %arg2: i32, %arg3: memref<16x32xbf16, #tpu.memory_space<vmem>>, %arg4: memref<32x96xbf16, #tpu.memory_space<vmem>>, %arg5: memref<1x96xf32, #tpu.memory_space<vmem>>, %arg6: memref<16x96xbf16, #tpu.memory_space<vmem>>, %arg7: memref<16x96xf32, #tpu.memory_space<vmem>>) attributes {dimension_semantics = [#tpu.dimension_semantics<parallel>, #tpu.dimension_semantics<parallel>, #tpu.dimension_semantics<arbitrary>], iteration_bounds = array<i64: 1, 1, 1>, scalar_prefetch = 0 : i64, scratch_operands = 1 : i64, tpu.core_type = #tpu.core_type<tc>, window_params = [{transform_indices = @transform_0, window_bounds = array<i64: 16, 32>}, {transform_indices = @transform_1, window_bounds = array<i64: 32, 96>}, {transform_indices = @transform_2, window_bounds = array<i64: 1, 96>}, {transform_indices = @transform_3, window_bounds = array<i64: 16, 96>}]} {
    %c0_i32 = arith.constant 0 : i32
    %0 = arith.cmpi eq, %arg2, %c0_i32 : i32
    %1 = arith.extui %0 : i1 to i32
    %c0_i32_0 = arith.constant 0 : i32
    %2 = arith.cmpi ne, %1, %c0_i32_0 : i32
    scf.if %2 {
      %cst_10 = arith.constant 0.000000e+00 : f32
      %12 = vector.broadcast %cst_10 : f32 to vector<16x96xf32>
      %c0_11 = arith.constant 0 : index
      %c0_12 = arith.constant 0 : index
      %13 = vector.load %arg7[%c0_11, %c0_12] : memref<16x96xf32, #tpu.memory_space<vmem>>, vector<16x96xf32>
      tpu.vector_store %arg7[%c0_11, %c0_12], %12 {strides = array<i32>} : memref<16x96xf32, #tpu.memory_space<vmem>>, vector<16x96xf32>,
    } else {
    }
    %c0 = arith.constant 0 : index
    %c0_1 = arith.constant 0 : index
    %3 = vector.load %arg7[%c0, %c0_1] : memref<16x96xf32, #tpu.memory_space<vmem>>, vector<16x96xf32>
    %c0_2 = arith.constant 0 : index
    %c0_3 = arith.constant 0 : index
    %4 = vector.load %arg3[%c0_2, %c0_3] : memref<16x32xbf16, #tpu.memory_space<vmem>>, vector<16x32xbf16>
    %c0_4 = arith.constant 0 : index
    %c0_5 = arith.constant 0 : index
    %5 = vector.load %arg4[%c0_4, %c0_5] : memref<32x96xbf16, #tpu.memory_space<vmem>>, vector<32x96xbf16>
    %cst = arith.constant dense<0.000000e+00> : vector<16x96xf32>
    %6 = tpu.matmul %4, %5, %cst {dimension_numbers = #tpu.dot_dimension_numbers<[1], [0], [0], [1], [0, 0, 1, 1], [], []>} : vector<16x32xbf16>, vector<32x96xbf16>, vector<16x96xf32> -> vector<16x96xf32>
    %7 = arith.addf %3, %6 : vector<16x96xf32>
    %c0_6 = arith.constant 0 : index
    %c0_7 = arith.constant 0 : index
    %8 = vector.load %arg7[%c0_6, %c0_7] : memref<16x96xf32, #tpu.memory_space<vmem>>, vector<16x96xf32>
    tpu.vector_store %arg7[%c0_6, %c0_7], %7 {strides = array<i32>} : memref<16x96xf32, #tpu.memory_space<vmem>>, vector<16x96xf32>,
    %c0_i32_8 = arith.constant 0 : i32
    %9 = arith.cmpi eq, %arg2, %c0_i32_8 : i32
    %10 = arith.extui %9 : i1 to i32
    %c0_i32_9 = arith.constant 0 : i32
    %11 = arith.cmpi ne, %10, %c0_i32_9 : i32
    scf.if %11 {
      %c0_10 = arith.constant 0 : index
      %c0_11 = arith.constant 0 : index
      %12 = vector.load %arg7[%c0_10, %c0_11] : memref<16x96xf32, #tpu.memory_space<vmem>>, vector<16x96xf32>
      %c0_12 = arith.constant 0 : index
      %c0_13 = arith.constant 0 : index
      %13 = vector.load %arg5[%c0_12, %c0_13] : memref<1x96xf32, #tpu.memory_space<vmem>>, vector<1x96xf32>
      %14 = vector.broadcast %13 : vector<1x96xf32> to vector<16x96xf32>
      %15 = arith.addf %12, %14 : vector<16x96xf32>
      %16 = arith.truncf %15 : vector<16x96xf32> to vector<16x96xbf16>
      %c0_14 = arith.constant 0 : index
      %c0_15 = arith.constant 0 : index
      %17 = vector.load %arg6[%c0_14, %c0_15] : memref<16x96xbf16, #tpu.memory_space<vmem>>, vector<16x96xbf16>
      tpu.vector_store %arg6[%c0_14, %c0_15], %16 {strides = array<i32>} : memref<16x96xbf16, #tpu.memory_space<vmem>>, vector<16x96xbf16>,
    } else {
    }
    return
  }
  func.func @transform_0(%arg0: i32, %arg1: i32, %arg2: i32) -> (i32, i32) {
    %c0_i32 = arith.constant 0 : i32
    return %arg0, %arg2 : i32, i32
  }
  func.func @transform_1(%arg0: i32, %arg1: i32, %arg2: i32) -> (i32, i32) {
    %c0_i32 = arith.constant 0 : i32
    return %arg2, %arg1 : i32, i32
  }
  func.func @transform_2(%arg0: i32, %arg1: i32, %arg2: i32) -> (i32, i32) {
    %c0_i32 = arith.constant 0 : i32
    %c0_i32_0 = arith.constant 0 : i32
    return %c0_i32, %arg1 : i32, i32
  }
  func.func @transform_3(%arg0: i32, %arg1: i32, %arg2: i32) -> (i32, i32) {
    %c0_i32 = arith.constant 0 : i32
    return %arg0, %arg1 : i32, i32
  }
}

module attributes {stable_mosaic.version = 11 : i64} {
  func.func @_layernorm_kernel(%arg0: i32, %arg1: memref<16x32xf32, #tpu.memory_space<vmem>>, %arg2: memref<1x32xf32, #tpu.memory_space<vmem>>, %arg3: memref<1x32xf32, #tpu.memory_space<vmem>>, %arg4: memref<16x32xbf16, #tpu.memory_space<vmem>>) attributes {dimension_semantics = [#tpu.dimension_semantics<parallel>], iteration_bounds = array<i64: 1>, scalar_prefetch = 0 : i64, scratch_operands = 0 : i64, tpu.core_type = #tpu.core_type<tc>, window_params = [{transform_indices = @transform_0, window_bounds = array<i64: 16, 32>}, {pipeline_mode = #tpu.pipeline_mode<synchronous>, transform_indices = @transform_1, window_bounds = array<i64: 1, 32>}, {pipeline_mode = #tpu.pipeline_mode<synchronous>, transform_indices = @transform_2, window_bounds = array<i64: 1, 32>}, {transform_indices = @transform_3, window_bounds = array<i64: 16, 32>}]} {
    %c0 = arith.constant 0 : index
    %c0_0 = arith.constant 0 : index
    %0 = vector.load %arg1[%c0, %c0_0] : memref<16x32xf32, #tpu.memory_space<vmem>>, vector<16x32xf32>
    %cst = arith.constant dense<0.000000e+00> : vector<16xf32>
    %1 = vector.multi_reduction <add>, %0, %cst [1] : vector<16x32xf32> to vector<16xf32>
    %2 = vector.shape_cast %1 : vector<16xf32> to vector<16x1xf32>
    %cst_1 = arith.constant 3.200000e+01 : f32
    %3 = vector.broadcast %cst_1 : f32 to vector<16x1xf32>
    %4 = arith.divf %2, %3 : vector<16x1xf32>
    %5 = arith.mulf %0, %0 : vector<16x32xf32>
    %cst_2 = arith.constant dense<0.000000e+00> : vector<16xf32>
    %6 = vector.multi_reduction <add>, %5, %cst_2 [1] : vector<16x32xf32> to vector<16xf32>
    %7 = vector.shape_cast %6 : vector<16xf32> to vector<16x1xf32>
    %cst_3 = arith.constant 3.200000e+01 : f32
    %8 = vector.broadcast %cst_3 : f32 to vector<16x1xf32>
    %9 = arith.divf %7, %8 : vector<16x1xf32>
    %10 = arith.mulf %4, %4 : vector<16x1xf32>
    %11 = arith.subf %9, %10 : vector<16x1xf32>
    %cst_4 = arith.constant 0.000000e+00 : f32
    %12 = vector.broadcast %cst_4 : f32 to vector<16x1xf32>
    %13 = arith.maximumf %11, %12 : vector<16x1xf32>
    %14 = vector.broadcast %4 : vector<16x1xf32> to vector<16x32xf32>
    %15 = arith.subf %0, %14 : vector<16x32xf32>
    %cst_5 = arith.constant 9.99999996E-13 : f32
    %16 = vector.broadcast %cst_5 : f32 to vector<16x1xf32>
    %17 = arith.addf %13, %16 : vector<16x1xf32>
    %18 = math.rsqrt %17 : vector<16x1xf32>
    %19 = vector.broadcast %18 : vector<16x1xf32> to vector<16x32xf32>
    %20 = arith.mulf %15, %19 : vector<16x32xf32>
    %c0_6 = arith.constant 0 : index
    %c0_7 = arith.constant 0 : index
    %21 = vector.load %arg2[%c0_6, %c0_7] : memref<1x32xf32, #tpu.memory_space<vmem>>, vector<1x32xf32>
    %22 = vector.broadcast %21 : vector<1x32xf32> to vector<16x32xf32>
    %23 = arith.mulf %20, %22 : vector<16x32xf32>
    %c0_8 = arith.constant 0 : index
    %c0_9 = arith.constant 0 : index
    %24 = vector.load %arg3[%c0_8, %c0_9] : memref<1x32xf32, #tpu.memory_space<vmem>>, vector<1x32xf32>
    %25 = vector.broadcast %24 : vector<1x32xf32> to vector<16x32xf32>
    %26 = arith.addf %23, %25 : vector<16x32xf32>
    %27 = arith.truncf %26 : vector<16x32xf32> to vector<16x32xbf16>
    %c0_10 = arith.constant 0 : index
    %c0_11 = arith.constant 0 : index
    %28 = vector.load %arg4[%c0_10, %c0_11] : memref<16x32xbf16, #tpu.memory_space<vmem>>, vector<16x32xbf16>
    tpu.vector_store %arg4[%c0_10, %c0_11], %27 {strides = array<i32>} : memref<16x32xbf16, #tpu.memory_space<vmem>>, vector<16x32xbf16>,
    return
  }
  func.func @transform_0(%arg0: i32) -> (i32, i32) {
    %c0_i32 = arith.constant 0 : i32
    %c0_i32_0 = arith.constant 0 : i32
    return %arg0, %c0_i32 : i32, i32
  }
  func.func @transform_1(%arg0: i32) -> (i32, i32) {
    %c0_i32 = arith.constant 0 : i32
    %c0_i32_0 = arith.constant 0 : i32
    %c0_i32_1 = arith.constant 0 : i32
    return %c0_i32, %c0_i32_0 : i32, i32
  }
  func.func @transform_2(%arg0: i32) -> (i32, i32) {
    %c0_i32 = arith.constant 0 : i32
    %c0_i32_0 = arith.constant 0 : i32
    %c0_i32_1 = arith.constant 0 : i32
    return %c0_i32, %c0_i32_0 : i32, i32
  }
  func.func @transform_3(%arg0: i32) -> (i32, i32) {
    %c0_i32 = arith.constant 0 : i32
    %c0_i32_0 = arith.constant 0 : i32
    return %arg0, %c0_i32 : i32, i32
  }
}

module attributes {stable_mosaic.version = 11 : i64} {
  func.func @_flash_attn_kernel(%arg0: i32, %arg1: i32, %arg2: i32, %arg3: i32, %arg4: memref<1x1x8x8xbf16, #tpu.memory_space<vmem>>, %arg5: memref<1x1x8x8xbf16, #tpu.memory_space<vmem>>, %arg6: memref<1x1x8x8xbf16, #tpu.memory_space<vmem>>, %arg7: memref<1x1x8xf32, #tpu.memory_space<vmem>>, %arg8: memref<1x1x8x8xbf16, #tpu.memory_space<vmem>>, %arg9: memref<8x1xf32, #tpu.memory_space<vmem>>, %arg10: memref<8x1xf32, #tpu.memory_space<vmem>>, %arg11: memref<8x8xf32, #tpu.memory_space<vmem>>) attributes {dimension_semantics = [#tpu.dimension_semantics<parallel>, #tpu.dimension_semantics<parallel>, #tpu.dimension_semantics<parallel>, #tpu.dimension_semantics<arbitrary>], iteration_bounds = array<i64: 2, 4, 1, 1>, scalar_prefetch = 0 : i64, scratch_operands = 3 : i64, tpu.core_type = #tpu.core_type<tc>, window_params = [{transform_indices = @transform_0, window_bounds = array<i64: 1, 1, 8, 8>}, {transform_indices = @transform_1, window_bounds = array<i64: 1, 1, 8, 8>}, {transform_indices = @transform_2, window_bounds = array<i64: 1, 1, 8, 8>}, {transform_indices = @transform_3, window_bounds = array<i64: 1, 1, 8>}, {transform_indices = @transform_4, window_bounds = array<i64: 1, 1, 8, 8>}]} {
    %c0_i32 = arith.constant 0 : i32
    %0 = arith.cmpi eq, %arg3, %c0_i32 : i32
    %1 = arith.extui %0 : i1 to i32
    %c0_i32_0 = arith.constant 0 : i32
    %2 = arith.cmpi ne, %1, %c0_i32_0 : i32
    scf.if %2 {
      %cst_33 = arith.constant 0xFF800000 : f32
      %42 = vector.broadcast %cst_33 : f32 to vector<8x1xf32>
      %c0_34 = arith.constant 0 : index
      %c0_35 = arith.constant 0 : index
      %43 = vector.load %arg9[%c0_34, %c0_35] : memref<8x1xf32, #tpu.memory_space<vmem>>, vector<8x1xf32>
      tpu.vector_store %arg9[%c0_34, %c0_35], %42 {strides = array<i32>} : memref<8x1xf32, #tpu.memory_space<vmem>>, vector<8x1xf32>,
      %cst_36 = arith.constant 0.000000e+00 : f32
      %44 = vector.broadcast %cst_36 : f32 to vector<8x1xf32>
      %c0_37 = arith.constant 0 : index
      %c0_38 = arith.constant 0 : index
      %45 = vector.load %arg10[%c0_37, %c0_38] : memref<8x1xf32, #tpu.memory_space<vmem>>, vector<8x1xf32>
      tpu.vector_store %arg10[%c0_37, %c0_38], %44 {strides = array<i32>} : memref<8x1xf32, #tpu.memory_space<vmem>>, vector<8x1xf32>,
      %cst_39 = arith.constant 0.000000e+00 : f32
      %46 = vector.broadcast %cst_39 : f32 to vector<8x8xf32>
      %c0_40 = arith.constant 0 : index
      %c0_41 = arith.constant 0 : index
      %47 = vector.load %arg11[%c0_40, %c0_41] : memref<8x8xf32, #tpu.memory_space<vmem>>, vector<8x8xf32>
      tpu.vector_store %arg11[%c0_40, %c0_41], %46 {strides = array<i32>} : memref<8x8xf32, #tpu.memory_space<vmem>>, vector<8x8xf32>,
    } else {
    }
    %c0 = arith.constant 0 : index
    %c0_1 = arith.constant 0 : index
    %c0_2 = arith.constant 0 : index
    %c0_3 = arith.constant 0 : index
    %3 = vector.load %arg4[%c0, %c0_1, %c0_2, %c0_3] : memref<1x1x8x8xbf16, #tpu.memory_space<vmem>>, vector<1x1x8x8xbf16>
    %4 = vector.shape_cast %3 : vector<1x1x8x8xbf16> to vector<8x8xbf16>
    %c0_4 = arith.constant 0 : index
    %c0_5 = arith.constant 0 : index
    %c0_6 = arith.constant 0 : index
    %c0_7 = arith.constant 0 : index
    %5 = vector.load %arg5[%c0_4, %c0_5, %c0_6, %c0_7] : memref<1x1x8x8xbf16, #tpu.memory_space<vmem>>, vector<1x1x8x8xbf16>
    %6 = vector.shape_cast %5 : vector<1x1x8x8xbf16> to vector<8x8xbf16>
    %c0_8 = arith.constant 0 : index
    %c0_9 = arith.constant 0 : index
    %c0_10 = arith.constant 0 : index
    %c0_11 = arith.constant 0 : index
    %7 = vector.load %arg6[%c0_8, %c0_9, %c0_10, %c0_11] : memref<1x1x8x8xbf16, #tpu.memory_space<vmem>>, vector<1x1x8x8xbf16>
    %8 = vector.shape_cast %7 : vector<1x1x8x8xbf16> to vector<8x8xbf16>
    %c0_12 = arith.constant 0 : index
    %c0_13 = arith.constant 0 : index
    %c0_14 = arith.constant 0 : index
    %9 = vector.load %arg7[%c0_12, %c0_13, %c0_14] : memref<1x1x8xf32, #tpu.memory_space<vmem>>, vector<1x1x8xf32>
    %10 = vector.shape_cast %9 : vector<1x1x8xf32> to vector<1x8xf32>
    %cst = arith.constant dense<0.000000e+00> : vector<8x8xf32>
    %11 = tpu.matmul %4, %6, %cst {dimension_numbers = #tpu.dot_dimension_numbers<[1], [0], [0], [1], [0, 0, 1, 1], [], []>} : vector<8x8xbf16>, vector<8x8xbf16>, vector<8x8xf32> -> vector<8x8xf32>
    %cst_15 = arith.constant 0.353553385 : f32
    %12 = vector.broadcast %cst_15 : f32 to vector<8x8xf32>
    %13 = arith.mulf %11, %12 : vector<8x8xf32>
    %14 = vector.broadcast %10 : vector<1x8xf32> to vector<8x8xf32>
    %15 = arith.addf %13, %14 : vector<8x8xf32>
    %c0_16 = arith.constant 0 : index
    %c0_17 = arith.constant 0 : index
    %16 = vector.load %arg9[%c0_16, %c0_17] : memref<8x1xf32, #tpu.memory_space<vmem>>, vector<8x1xf32>
    %cst_18 = arith.constant dense<0xFF800000> : vector<8xf32>
    %17 = vector.multi_reduction <maximumf>, %15, %cst_18 [1] : vector<8x8xf32> to vector<8xf32>
    %18 = vector.shape_cast %17 : vector<8xf32> to vector<8x1xf32>
    %19 = arith.maximumf %16, %18 : vector<8x1xf32>
    %20 = arith.subf %16, %19 : vector<8x1xf32>
    %21 = math.exp %20 : vector<8x1xf32>
    %22 = vector.broadcast %19 : vector<8x1xf32> to vector<8x8xf32>
    %23 = arith.subf %15, %22 : vector<8x8xf32>
    %24 = math.exp %23 : vector<8x8xf32>
    %c0_19 = arith.constant 0 : index
    %c0_20 = arith.constant 0 : index
    %25 = vector.load %arg10[%c0_19, %c0_20] : memref<8x1xf32, #tpu.memory_space<vmem>>, vector<8x1xf32>
    %26 = arith.mulf %21, %25 : vector<8x1xf32>
    %cst_21 = arith.constant dense<0.000000e+00> : vector<8xf32>
    %27 = vector.multi_reduction <add>, %24, %cst_21 [1] : vector<8x8xf32> to vector<8xf32>
    %28 = vector.shape_cast %27 : vector<8xf32> to vector<8x1xf32>
    %29 = arith.addf %26, %28 : vector<8x1xf32>
    %c0_22 = arith.constant 0 : index
    %c0_23 = arith.constant 0 : index
    %30 = vector.load %arg10[%c0_22, %c0_23] : memref<8x1xf32, #tpu.memory_space<vmem>>, vector<8x1xf32>
    tpu.vector_store %arg10[%c0_22, %c0_23], %29 {strides = array<i32>} : memref<8x1xf32, #tpu.memory_space<vmem>>, vector<8x1xf32>,
    %c0_24 = arith.constant 0 : index
    %c0_25 = arith.constant 0 : index
    %31 = vector.load %arg11[%c0_24, %c0_25] : memref<8x8xf32, #tpu.memory_space<vmem>>, vector<8x8xf32>
    %32 = vector.broadcast %21 : vector<8x1xf32> to vector<8x8xf32>
    %33 = arith.mulf %32, %31 : vector<8x8xf32>
    %34 = arith.truncf %24 : vector<8x8xf32> to vector<8x8xbf16>
    %cst_26 = arith.constant dense<0.000000e+00> : vector<8x8xf32>
    %35 = tpu.matmul %34, %8, %cst_26 {dimension_numbers = #tpu.dot_dimension_numbers<[1], [0], [0], [1], [0, 0, 1, 1], [], []>} : vector<8x8xbf16>, vector<8x8xbf16>, vector<8x8xf32> -> vector<8x8xf32>
    %36 = arith.addf %33, %35 : vector<8x8xf32>
    %c0_27 = arith.constant 0 : index
    %c0_28 = arith.constant 0 : index
    %37 = vector.load %arg11[%c0_27, %c0_28] : memref<8x8xf32, #tpu.memory_space<vmem>>, vector<8x8xf32>
    tpu.vector_store %arg11[%c0_27, %c0_28], %36 {strides = array<i32>} : memref<8x8xf32, #tpu.memory_space<vmem>>, vector<8x8xf32>,
    %c0_29 = arith.constant 0 : index
    %c0_30 = arith.constant 0 : index
    %38 = vector.load %arg9[%c0_29, %c0_30] : memref<8x1xf32, #tpu.memory_space<vmem>>, vector<8x1xf32>
    tpu.vector_store %arg9[%c0_29, %c0_30], %19 {strides = array<i32>} : memref<8x1xf32, #tpu.memory_space<vmem>>, vector<8x1xf32>,
    %c0_i32_31 = arith.constant 0 : i32
    %39 = arith.cmpi eq, %arg3, %c0_i32_31 : i32
    %40 = arith.extui %39 : i1 to i32
    %c0_i32_32 = arith.constant 0 : i32
    %41 = arith.cmpi ne, %40, %c0_i32_32 : i32
    scf.if %41 {
      %c0_33 = arith.constant 0 : index
      %c0_34 = arith.constant 0 : index
      %42 = vector.load %arg11[%c0_33, %c0_34] : memref<8x8xf32, #tpu.memory_space<vmem>>, vector<8x8xf32>
      %c0_35 = arith.constant 0 : index
      %c0_36 = arith.constant 0 : index
      %43 = vector.load %arg10[%c0_35, %c0_36] : memref<8x1xf32, #tpu.memory_space<vmem>>, vector<8x1xf32>
      %44 = vector.broadcast %43 : vector<8x1xf32> to vector<8x8xf32>
      %45 = arith.divf %42, %44 : vector<8x8xf32>
      %46 = arith.truncf %45 : vector<8x8xf32> to vector<8x8xbf16>
      %c0_37 = arith.constant 0 : index
      %c0_38 = arith.constant 0 : index
      %c0_39 = arith.constant 0 : index
      %c0_40 = arith.constant 0 : index
      %47 = vector.load %arg8[%c0_37, %c0_38, %c0_39, %c0_40] : memref<1x1x8x8xbf16, #tpu.memory_space<vmem>>, vector<1x1x8x8xbf16>
      %48 = vector.shape_cast %47 : vector<1x1x8x8xbf16> to vector<8x8xbf16>
      %49 = vector.shape_cast %46 : vector<8x8xbf16> to vector<1x1x8x8xbf16>
      tpu.vector_store %arg8[%c0_37, %c0_38, %c0_39, %c0_40], %49 {strides = array<i32>} : memref<1x1x8x8xbf16, #tpu.memory_space<vmem>>, vector<1x1x8x8xbf16>,
    } else {
    }
    return
  }
  func.func @transform_0(%arg0: i32, %arg1: i32, %arg2: i32, %arg3: i32) -> (i32, i32, i32, i32) {
    %c0_i32 = arith.constant 0 : i32
    %c0_i32_0 = arith.constant 0 : i32
    return %arg0, %arg1, %arg2, %c0_i32 : i32, i32, i32, i32
  }
  func.func @transform_1(%arg0: i32, %arg1: i32, %arg2: i32, %arg3: i32) -> (i32, i32, i32, i32) {
    %c0_i32 = arith.constant 0 : i32
    %c0_i32_0 = arith.constant 0 : i32
    return %arg0, %arg1, %c0_i32, %arg3 : i32, i32, i32, i32
  }
  func.func @transform_2(%arg0: i32, %arg1: i32, %arg2: i32, %arg3: i32) -> (i32, i32, i32, i32) {
    %c0_i32 = arith.constant 0 : i32
    %c0_i32_0 = arith.constant 0 : i32
    return %arg0, %arg1, %arg3, %c0_i32 : i32, i32, i32, i32
  }
  func.func @transform_3(%arg0: i32, %arg1: i32, %arg2: i32, %arg3: i32) -> (i32, i32, i32) {
    %c0_i32 = arith.constant 0 : i32
    %c0_i32_0 = arith.constant 0 : i32
    return %arg0, %c0_i32, %arg3 : i32, i32, i32
  }
  func.func @transform_4(%arg0: i32, %arg1: i32, %arg2: i32, %arg3: i32) -> (i32, i32, i32, i32) {
    %c0_i32 = arith.constant 0 : i32
    %c0_i32_0 = arith.constant 0 : i32
    return %arg0, %arg1, %arg2, %c0_i32 : i32, i32, i32, i32
  }
}

module attributes {stable_mosaic.version = 11 : i64} {
  func.func @_dense_ln_kernel(%arg0: i32, %arg1: i32, %arg2: memref<16x32xbf16, #tpu.memory_space<vmem>>, %arg3: memref<32x32xbf16, #tpu.memory_space<vmem>>, %arg4: memref<1x32xf32, #tpu.memory_space<vmem>>, %arg5: memref<16x32xbf16, #tpu.memory_space<vmem>>, %arg6: memref<1x32xf32, #tpu.memory_space<vmem>>, %arg7: memref<1x32xf32, #tpu.memory_space<vmem>>, %arg8: memref<16x32xbf16, #tpu.memory_space<vmem>>, %arg9: memref<16x32xf32, #tpu.memory_space<vmem>>) attributes {dimension_semantics = [#tpu.dimension_semantics<parallel>, #tpu.dimension_semantics<arbitrary>], iteration_bounds = array<i64: 1, 1>, scalar_prefetch = 0 : i64, scratch_operands = 1 : i64, tpu.core_type = #tpu.core_type<tc>, window_params = [{transform_indices = @transform_0, window_bounds = array<i64: 16, 32>}, {transform_indices = @transform_1, window_bounds = array<i64: 32, 32>}, {pipeline_mode = #tpu.pipeline_mode<synchronous>, transform_indices = @transform_2, window_bounds = array<i64: 1, 32>}, {transform_indices = @transform_3, window_bounds = array<i64: 16, 32>}, {pipeline_mode = #tpu.pipeline_mode<synchronous>, transform_indices = @transform_4, window_bounds = array<i64: 1, 32>}, {pipeline_mode = #tpu.pipeline_mode<synchronous>, transform_indices = @transform_5, window_bounds = array<i64: 1, 32>}, {transform_indices = @transform_6, window_bounds = array<i64: 16, 32>}]} {
    %c0_i32 = arith.constant 0 : i32
    %0 = arith.cmpi eq, %arg1, %c0_i32 : i32
    %1 = arith.extui %0 : i1 to i32
    %c0_i32_0 = arith.constant 0 : i32
    %2 = arith.cmpi ne, %1, %c0_i32_0 : i32
    scf.if %2 {
      %cst_10 = arith.constant 0.000000e+00 : f32
      %12 = vector.broadcast %cst_10 : f32 to vector<16x32xf32>
      %c0_11 = arith.constant 0 : index
      %c0_12 = arith.constant 0 : index
      %13 = vector.load %arg9[%c0_11, %c0_12] : memref<16x32xf32, #tpu.memory_space<vmem>>, vector<16x32xf32>
      tpu.vector_store %arg9[%c0_11, %c0_12], %12 {strides = array<i32>} : memref<16x32xf32, #tpu.memory_space<vmem>>, vector<16x32xf32>,
    } else {
    }
    %c0 = arith.constant 0 : index
    %c0_1 = arith.constant 0 : index
    %3 = vector.load %arg9[%c0, %c0_1] : memref<16x32xf32, #tpu.memory_space<vmem>>, vector<16x32xf32>
    %c0_2 = arith.constant 0 : index
    %c0_3 = arith.constant 0 : index
    %4 = vector.load %arg2[%c0_2, %c0_3] : memref<16x32xbf16, #tpu.memory_space<vmem>>, vector<16x32xbf16>
    %c0_4 = arith.constant 0 : index
    %c0_5 = arith.constant 0 : index
    %5 = vector.load %arg3[%c0_4, %c0_5] : memref<32x32xbf16, #tpu.memory_space<vmem>>, vector<32x32xbf16>
    %cst = arith.constant dense<0.000000e+00> : vector<16x32xf32>
    %6 = tpu.matmul %4, %5, %cst {dimension_numbers = #tpu.dot_dimension_numbers<[1], [0], [0], [1], [0, 0, 1, 1], [], []>} : vector<16x32xbf16>, vector<32x32xbf16>, vector<16x32xf32> -> vector<16x32xf32>
    %7 = arith.addf %3, %6 : vector<16x32xf32>
    %c0_6 = arith.constant 0 : index
    %c0_7 = arith.constant 0 : index
    %8 = vector.load %arg9[%c0_6, %c0_7] : memref<16x32xf32, #tpu.memory_space<vmem>>, vector<16x32xf32>
    tpu.vector_store %arg9[%c0_6, %c0_7], %7 {strides = array<i32>} : memref<16x32xf32, #tpu.memory_space<vmem>>, vector<16x32xf32>,
    %c0_i32_8 = arith.constant 0 : i32
    %9 = arith.cmpi eq, %arg1, %c0_i32_8 : i32
    %10 = arith.extui %9 : i1 to i32
    %c0_i32_9 = arith.constant 0 : i32
    %11 = arith.cmpi ne, %10, %c0_i32_9 : i32
    scf.if %11 {
      %c0_10 = arith.constant 0 : index
      %c0_11 = arith.constant 0 : index
      %12 = vector.load %arg9[%c0_10, %c0_11] : memref<16x32xf32, #tpu.memory_space<vmem>>, vector<16x32xf32>
      %c0_12 = arith.constant 0 : index
      %c0_13 = arith.constant 0 : index
      %13 = vector.load %arg4[%c0_12, %c0_13] : memref<1x32xf32, #tpu.memory_space<vmem>>, vector<1x32xf32>
      %14 = vector.broadcast %13 : vector<1x32xf32> to vector<16x32xf32>
      %15 = arith.addf %12, %14 : vector<16x32xf32>
      %c0_14 = arith.constant 0 : index
      %c0_15 = arith.constant 0 : index
      %16 = vector.load %arg5[%c0_14, %c0_15] : memref<16x32xbf16, #tpu.memory_space<vmem>>, vector<16x32xbf16>
      %17 = arith.extf %16 : vector<16x32xbf16> to vector<16x32xf32>
      %18 = arith.addf %15, %17 : vector<16x32xf32>
      %cst_16 = arith.constant dense<0.000000e+00> : vector<16xf32>
      %19 = vector.multi_reduction <add>, %18, %cst_16 [1] : vector<16x32xf32> to vector<16xf32>
      %20 = vector.shape_cast %19 : vector<16xf32> to vector<16x1xf32>
      %cst_17 = arith.constant 3.200000e+01 : f32
      %21 = vector.broadcast %cst_17 : f32 to vector<16x1xf32>
      %22 = arith.divf %20, %21 : vector<16x1xf32>
      %23 = arith.mulf %18, %18 : vector<16x32xf32>
      %cst_18 = arith.constant dense<0.000000e+00> : vector<16xf32>
      %24 = vector.multi_reduction <add>, %23, %cst_18 [1] : vector<16x32xf32> to vector<16xf32>
      %25 = vector.shape_cast %24 : vector<16xf32> to vector<16x1xf32>
      %cst_19 = arith.constant 3.200000e+01 : f32
      %26 = vector.broadcast %cst_19 : f32 to vector<16x1xf32>
      %27 = arith.divf %25, %26 : vector<16x1xf32>
      %28 = arith.mulf %22, %22 : vector<16x1xf32>
      %29 = arith.subf %27, %28 : vector<16x1xf32>
      %cst_20 = arith.constant 0.000000e+00 : f32
      %30 = vector.broadcast %cst_20 : f32 to vector<16x1xf32>
      %31 = arith.maximumf %29, %30 : vector<16x1xf32>
      %32 = vector.broadcast %22 : vector<16x1xf32> to vector<16x32xf32>
      %33 = arith.subf %18, %32 : vector<16x32xf32>
      %cst_21 = arith.constant 9.99999996E-13 : f32
      %34 = vector.broadcast %cst_21 : f32 to vector<16x1xf32>
      %35 = arith.addf %31, %34 : vector<16x1xf32>
      %36 = math.rsqrt %35 : vector<16x1xf32>
      %37 = vector.broadcast %36 : vector<16x1xf32> to vector<16x32xf32>
      %38 = arith.mulf %33, %37 : vector<16x32xf32>
      %c0_22 = arith.constant 0 : index
      %c0_23 = arith.constant 0 : index
      %39 = vector.load %arg6[%c0_22, %c0_23] : memref<1x32xf32, #tpu.memory_space<vmem>>, vector<1x32xf32>
      %40 = vector.broadcast %39 : vector<1x32xf32> to vector<16x32xf32>
      %41 = arith.mulf %38, %40 : vector<16x32xf32>
      %c0_24 = arith.constant 0 : index
      %c0_25 = arith.constant 0 : index
      %42 = vector.load %arg7[%c0_24, %c0_25] : memref<1x32xf32, #tpu.memory_space<vmem>>, vector<1x32xf32>
      %43 = vector.broadcast %42 : vector<1x32xf32> to vector<16x32xf32>
      %44 = arith.addf %41, %43 : vector<16x32xf32>
      %45 = arith.truncf %44 : vector<16x32xf32> to vector<16x32xbf16>
      %c0_26 = arith.constant 0 : index
      %c0_27 = arith.constant 0 : index
      %46 = vector.load %arg8[%c0_26, %c0_27] : memref<16x32xbf16, #tpu.memory_space<vmem>>, vector<16x32xbf16>
      tpu.vector_store %arg8[%c0_26, %c0_27], %45 {strides = array<i32>} : memref<16x32xbf16, #tpu.memory_space<vmem>>, vector<16x32xbf16>,
    } else {
    }
    return
  }
  func.func @transform_0(%arg0: i32, %arg1: i32) -> (i32, i32) {
    %c0_i32 = arith.constant 0 : i32
    return %arg0, %arg1 : i32, i32
  }
  func.func @transform_1(%arg0: i32, %arg1: i32) -> (i32, i32) {
    %c0_i32 = arith.constant 0 : i32
    %c0_i32_0 = arith.constant 0 : i32
    return %arg1, %c0_i32 : i32, i32
  }
  func.func @transform_2(%arg0: i32, %arg1: i32) -> (i32, i32) {
    %c0_i32 = arith.constant 0 : i32
    %c0_i32_0 = arith.constant 0 : i32
    %c0_i32_1 = arith.constant 0 : i32
    return %c0_i32, %c0_i32_0 : i32, i32
  }
  func.func @transform_3(%arg0: i32, %arg1: i32) -> (i32, i32) {
    %c0_i32 = arith.constant 0 : i32
    %c0_i32_0 = arith.constant 0 : i32
    return %arg0, %c0_i32 : i32, i32
  }
  func.func @transform_4(%arg0: i32, %arg1: i32) -> (i32, i32) {
    %c0_i32 = arith.constant 0 : i32
    %c0_i32_0 = arith.constant 0 : i32
    %c0_i32_1 = arith.constant 0 : i32
    return %c0_i32, %c0_i32_0 : i32, i32
  }
  func.func @transform_5(%arg0: i32, %arg1: i32) -> (i32, i32) {
    %c0_i32 = arith.constant 0 : i32
    %c0_i32_0 = arith.constant 0 : i32
    %c0_i32_1 = arith.constant 0 : i32
    return %c0_i32, %c0_i32_0 : i32, i32
  }
  func.func @transform_6(%arg0: i32, %arg1: i32) -> (i32, i32) {
    %c0_i32 = arith.constant 0 : i32
    %c0_i32_0 = arith.constant 0 : i32
    return %arg0, %c0_i32 : i32, i32
  }
}

module attributes {stable_mosaic.version = 11 : i64} {
  func.func @_dense_kernel(%arg0: i32, %arg1: i32, %arg2: i32, %arg3: memref<16x32xbf16, #tpu.memory_space<vmem>>, %arg4: memref<32x64xbf16, #tpu.memory_space<vmem>>, %arg5: memref<1x64xf32, #tpu.memory_space<vmem>>, %arg6: memref<16x64xbf16, #tpu.memory_space<vmem>>, %arg7: memref<16x64xf32, #tpu.memory_space<vmem>>) attributes {dimension_semantics = [#tpu.dimension_semantics<parallel>, #tpu.dimension_semantics<parallel>, #tpu.dimension_semantics<arbitrary>], iteration_bounds = array<i64: 1, 1, 1>, scalar_prefetch = 0 : i64, scratch_operands = 1 : i64, tpu.core_type = #tpu.core_type<tc>, window_params = [{transform_indices = @transform_0, window_bounds = array<i64: 16, 32>}, {transform_indices = @transform_1, window_bounds = array<i64: 32, 64>}, {transform_indices = @transform_2, window_bounds = array<i64: 1, 64>}, {transform_indices = @transform_3, window_bounds = array<i64: 16, 64>}]} {
    %c0_i32 = arith.constant 0 : i32
    %0 = arith.cmpi eq, %arg2, %c0_i32 : i32
    %1 = arith.extui %0 : i1 to i32
    %c0_i32_0 = arith.constant 0 : i32
    %2 = arith.cmpi ne, %1, %c0_i32_0 : i32
    scf.if %2 {
      %cst_10 = arith.constant 0.000000e+00 : f32
      %12 = vector.broadcast %cst_10 : f32 to vector<16x64xf32>
      %c0_11 = arith.constant 0 : index
      %c0_12 = arith.constant 0 : index
      %13 = vector.load %arg7[%c0_11, %c0_12] : memref<16x64xf32, #tpu.memory_space<vmem>>, vector<16x64xf32>
      tpu.vector_store %arg7[%c0_11, %c0_12], %12 {strides = array<i32>} : memref<16x64xf32, #tpu.memory_space<vmem>>, vector<16x64xf32>,
    } else {
    }
    %c0 = arith.constant 0 : index
    %c0_1 = arith.constant 0 : index
    %3 = vector.load %arg7[%c0, %c0_1] : memref<16x64xf32, #tpu.memory_space<vmem>>, vector<16x64xf32>
    %c0_2 = arith.constant 0 : index
    %c0_3 = arith.constant 0 : index
    %4 = vector.load %arg3[%c0_2, %c0_3] : memref<16x32xbf16, #tpu.memory_space<vmem>>, vector<16x32xbf16>
    %c0_4 = arith.constant 0 : index
    %c0_5 = arith.constant 0 : index
    %5 = vector.load %arg4[%c0_4, %c0_5] : memref<32x64xbf16, #tpu.memory_space<vmem>>, vector<32x64xbf16>
    %cst = arith.constant dense<0.000000e+00> : vector<16x64xf32>
    %6 = tpu.matmul %4, %5, %cst {dimension_numbers = #tpu.dot_dimension_numbers<[1], [0], [0], [1], [0, 0, 1, 1], [], []>} : vector<16x32xbf16>, vector<32x64xbf16>, vector<16x64xf32> -> vector<16x64xf32>
    %7 = arith.addf %3, %6 : vector<16x64xf32>
    %c0_6 = arith.constant 0 : index
    %c0_7 = arith.constant 0 : index
    %8 = vector.load %arg7[%c0_6, %c0_7] : memref<16x64xf32, #tpu.memory_space<vmem>>, vector<16x64xf32>
    tpu.vector_store %arg7[%c0_6, %c0_7], %7 {strides = array<i32>} : memref<16x64xf32, #tpu.memory_space<vmem>>, vector<16x64xf32>,
    %c0_i32_8 = arith.constant 0 : i32
    %9 = arith.cmpi eq, %arg2, %c0_i32_8 : i32
    %10 = arith.extui %9 : i1 to i32
    %c0_i32_9 = arith.constant 0 : i32
    %11 = arith.cmpi ne, %10, %c0_i32_9 : i32
    scf.if %11 {
      %c0_10 = arith.constant 0 : index
      %c0_11 = arith.constant 0 : index
      %12 = vector.load %arg7[%c0_10, %c0_11] : memref<16x64xf32, #tpu.memory_space<vmem>>, vector<16x64xf32>
      %c0_12 = arith.constant 0 : index
      %c0_13 = arith.constant 0 : index
      %13 = vector.load %arg5[%c0_12, %c0_13] : memref<1x64xf32, #tpu.memory_space<vmem>>, vector<1x64xf32>
      %14 = vector.broadcast %13 : vector<1x64xf32> to vector<16x64xf32>
      %15 = arith.addf %12, %14 : vector<16x64xf32>
      %16 = arith.mulf %15, %15 : vector<16x64xf32>
      %17 = arith.mulf %15, %16 : vector<16x64xf32>
      %cst_14 = arith.constant 4.471500e-02 : f32
      %18 = vector.broadcast %cst_14 : f32 to vector<16x64xf32>
      %19 = arith.mulf %18, %17 : vector<16x64xf32>
      %20 = arith.addf %15, %19 : vector<16x64xf32>
      %cst_15 = arith.constant 0.797884583 : f32
      %21 = vector.broadcast %cst_15 : f32 to vector<16x64xf32>
      %22 = arith.mulf %21, %20 : vector<16x64xf32>
      %23 = math.tanh %22 : vector<16x64xf32>
      %cst_16 = arith.constant 1.000000e+00 : f32
      %24 = vector.broadcast %cst_16 : f32 to vector<16x64xf32>
      %25 = arith.addf %24, %23 : vector<16x64xf32>
      %cst_17 = arith.constant 5.000000e-01 : f32
      %26 = vector.broadcast %cst_17 : f32 to vector<16x64xf32>
      %27 = arith.mulf %26, %25 : vector<16x64xf32>
      %28 = arith.mulf %15, %27 : vector<16x64xf32>
      %29 = arith.truncf %28 : vector<16x64xf32> to vector<16x64xbf16>
      %c0_18 = arith.constant 0 : index
      %c0_19 = arith.constant 0 : index
      %30 = vector.load %arg6[%c0_18, %c0_19] : memref<16x64xbf16, #tpu.memory_space<vmem>>, vector<16x64xbf16>
      tpu.vector_store %arg6[%c0_18, %c0_19], %29 {strides = array<i32>} : memref<16x64xbf16, #tpu.memory_space<vmem>>, vector<16x64xbf16>,
    } else {
    }
    return
  }
  func.func @transform_0(%arg0: i32, %arg1: i32, %arg2: i32) -> (i32, i32) {
    %c0_i32 = arith.constant 0 : i32
    return %arg0, %arg2 : i32, i32
  }
  func.func @transform_1(%arg0: i32, %arg1: i32, %arg2: i32) -> (i32, i32) {
    %c0_i32 = arith.constant 0 : i32
    return %arg2, %arg1 : i32, i32
  }
  func.func @transform_2(%arg0: i32, %arg1: i32, %arg2: i32) -> (i32, i32) {
    %c0_i32 = arith.constant 0 : i32
    %c0_i32_0 = arith.constant 0 : i32
    return %c0_i32, %arg1 : i32, i32
  }
  func.func @transform_3(%arg0: i32, %arg1: i32, %arg2: i32) -> (i32, i32) {
    %c0_i32 = arith.constant 0 : i32
    return %arg0, %arg1 : i32, i32
  }
}

module attributes {stable_mosaic.version = 11 : i64} {
  func.func @_dense_ln_kernel(%arg0: i32, %arg1: i32, %arg2: memref<16x64xbf16, #tpu.memory_space<vmem>>, %arg3: memref<64x32xbf16, #tpu.memory_space<vmem>>, %arg4: memref<1x32xf32, #tpu.memory_space<vmem>>, %arg5: memref<16x32xbf16, #tpu.memory_space<vmem>>, %arg6: memref<1x32xf32, #tpu.memory_space<vmem>>, %arg7: memref<1x32xf32, #tpu.memory_space<vmem>>, %arg8: memref<16x32xbf16, #tpu.memory_space<vmem>>, %arg9: memref<16x32xf32, #tpu.memory_space<vmem>>) attributes {dimension_semantics = [#tpu.dimension_semantics<parallel>, #tpu.dimension_semantics<arbitrary>], iteration_bounds = array<i64: 1, 1>, scalar_prefetch = 0 : i64, scratch_operands = 1 : i64, tpu.core_type = #tpu.core_type<tc>, window_params = [{transform_indices = @transform_0, window_bounds = array<i64: 16, 64>}, {transform_indices = @transform_1, window_bounds = array<i64: 64, 32>}, {pipeline_mode = #tpu.pipeline_mode<synchronous>, transform_indices = @transform_2, window_bounds = array<i64: 1, 32>}, {transform_indices = @transform_3, window_bounds = array<i64: 16, 32>}, {pipeline_mode = #tpu.pipeline_mode<synchronous>, transform_indices = @transform_4, window_bounds = array<i64: 1, 32>}, {pipeline_mode = #tpu.pipeline_mode<synchronous>, transform_indices = @transform_5, window_bounds = array<i64: 1, 32>}, {transform_indices = @transform_6, window_bounds = array<i64: 16, 32>}]} {
    %c0_i32 = arith.constant 0 : i32
    %0 = arith.cmpi eq, %arg1, %c0_i32 : i32
    %1 = arith.extui %0 : i1 to i32
    %c0_i32_0 = arith.constant 0 : i32
    %2 = arith.cmpi ne, %1, %c0_i32_0 : i32
    scf.if %2 {
      %cst_10 = arith.constant 0.000000e+00 : f32
      %12 = vector.broadcast %cst_10 : f32 to vector<16x32xf32>
      %c0_11 = arith.constant 0 : index
      %c0_12 = arith.constant 0 : index
      %13 = vector.load %arg9[%c0_11, %c0_12] : memref<16x32xf32, #tpu.memory_space<vmem>>, vector<16x32xf32>
      tpu.vector_store %arg9[%c0_11, %c0_12], %12 {strides = array<i32>} : memref<16x32xf32, #tpu.memory_space<vmem>>, vector<16x32xf32>,
    } else {
    }
    %c0 = arith.constant 0 : index
    %c0_1 = arith.constant 0 : index
    %3 = vector.load %arg9[%c0, %c0_1] : memref<16x32xf32, #tpu.memory_space<vmem>>, vector<16x32xf32>
    %c0_2 = arith.constant 0 : index
    %c0_3 = arith.constant 0 : index
    %4 = vector.load %arg2[%c0_2, %c0_3] : memref<16x64xbf16, #tpu.memory_space<vmem>>, vector<16x64xbf16>
    %c0_4 = arith.constant 0 : index
    %c0_5 = arith.constant 0 : index
    %5 = vector.load %arg3[%c0_4, %c0_5] : memref<64x32xbf16, #tpu.memory_space<vmem>>, vector<64x32xbf16>
    %cst = arith.constant dense<0.000000e+00> : vector<16x32xf32>
    %6 = tpu.matmul %4, %5, %cst {dimension_numbers = #tpu.dot_dimension_numbers<[1], [0], [0], [1], [0, 0, 1, 1], [], []>} : vector<16x64xbf16>, vector<64x32xbf16>, vector<16x32xf32> -> vector<16x32xf32>
    %7 = arith.addf %3, %6 : vector<16x32xf32>
    %c0_6 = arith.constant 0 : index
    %c0_7 = arith.constant 0 : index
    %8 = vector.load %arg9[%c0_6, %c0_7] : memref<16x32xf32, #tpu.memory_space<vmem>>, vector<16x32xf32>
    tpu.vector_store %arg9[%c0_6, %c0_7], %7 {strides = array<i32>} : memref<16x32xf32, #tpu.memory_space<vmem>>, vector<16x32xf32>,
    %c0_i32_8 = arith.constant 0 : i32
    %9 = arith.cmpi eq, %arg1, %c0_i32_8 : i32
    %10 = arith.extui %9 : i1 to i32
    %c0_i32_9 = arith.constant 0 : i32
    %11 = arith.cmpi ne, %10, %c0_i32_9 : i32
    scf.if %11 {
      %c0_10 = arith.constant 0 : index
      %c0_11 = arith.constant 0 : index
      %12 = vector.load %arg9[%c0_10, %c0_11] : memref<16x32xf32, #tpu.memory_space<vmem>>, vector<16x32xf32>
      %c0_12 = arith.constant 0 : index
      %c0_13 = arith.constant 0 : index
      %13 = vector.load %arg4[%c0_12, %c0_13] : memref<1x32xf32, #tpu.memory_space<vmem>>, vector<1x32xf32>
      %14 = vector.broadcast %13 : vector<1x32xf32> to vector<16x32xf32>
      %15 = arith.addf %12, %14 : vector<16x32xf32>
      %c0_14 = arith.constant 0 : index
      %c0_15 = arith.constant 0 : index
      %16 = vector.load %arg5[%c0_14, %c0_15] : memref<16x32xbf16, #tpu.memory_space<vmem>>, vector<16x32xbf16>
      %17 = arith.extf %16 : vector<16x32xbf16> to vector<16x32xf32>
      %18 = arith.addf %15, %17 : vector<16x32xf32>
      %cst_16 = arith.constant dense<0.000000e+00> : vector<16xf32>
      %19 = vector.multi_reduction <add>, %18, %cst_16 [1] : vector<16x32xf32> to vector<16xf32>
      %20 = vector.shape_cast %19 : vector<16xf32> to vector<16x1xf32>
      %cst_17 = arith.constant 3.200000e+01 : f32
      %21 = vector.broadcast %cst_17 : f32 to vector<16x1xf32>
      %22 = arith.divf %20, %21 : vector<16x1xf32>
      %23 = arith.mulf %18, %18 : vector<16x32xf32>
      %cst_18 = arith.constant dense<0.000000e+00> : vector<16xf32>
      %24 = vector.multi_reduction <add>, %23, %cst_18 [1] : vector<16x32xf32> to vector<16xf32>
      %25 = vector.shape_cast %24 : vector<16xf32> to vector<16x1xf32>
      %cst_19 = arith.constant 3.200000e+01 : f32
      %26 = vector.broadcast %cst_19 : f32 to vector<16x1xf32>
      %27 = arith.divf %25, %26 : vector<16x1xf32>
      %28 = arith.mulf %22, %22 : vector<16x1xf32>
      %29 = arith.subf %27, %28 : vector<16x1xf32>
      %cst_20 = arith.constant 0.000000e+00 : f32
      %30 = vector.broadcast %cst_20 : f32 to vector<16x1xf32>
      %31 = arith.maximumf %29, %30 : vector<16x1xf32>
      %32 = vector.broadcast %22 : vector<16x1xf32> to vector<16x32xf32>
      %33 = arith.subf %18, %32 : vector<16x32xf32>
      %cst_21 = arith.constant 9.99999996E-13 : f32
      %34 = vector.broadcast %cst_21 : f32 to vector<16x1xf32>
      %35 = arith.addf %31, %34 : vector<16x1xf32>
      %36 = math.rsqrt %35 : vector<16x1xf32>
      %37 = vector.broadcast %36 : vector<16x1xf32> to vector<16x32xf32>
      %38 = arith.mulf %33, %37 : vector<16x32xf32>
      %c0_22 = arith.constant 0 : index
      %c0_23 = arith.constant 0 : index
      %39 = vector.load %arg6[%c0_22, %c0_23] : memref<1x32xf32, #tpu.memory_space<vmem>>, vector<1x32xf32>
      %40 = vector.broadcast %39 : vector<1x32xf32> to vector<16x32xf32>
      %41 = arith.mulf %38, %40 : vector<16x32xf32>
      %c0_24 = arith.constant 0 : index
      %c0_25 = arith.constant 0 : index
      %42 = vector.load %arg7[%c0_24, %c0_25] : memref<1x32xf32, #tpu.memory_space<vmem>>, vector<1x32xf32>
      %43 = vector.broadcast %42 : vector<1x32xf32> to vector<16x32xf32>
      %44 = arith.addf %41, %43 : vector<16x32xf32>
      %45 = arith.truncf %44 : vector<16x32xf32> to vector<16x32xbf16>
      %c0_26 = arith.constant 0 : index
      %c0_27 = arith.constant 0 : index
      %46 = vector.load %arg8[%c0_26, %c0_27] : memref<16x32xbf16, #tpu.memory_space<vmem>>, vector<16x32xbf16>
      tpu.vector_store %arg8[%c0_26, %c0_27], %45 {strides = array<i32>} : memref<16x32xbf16, #tpu.memory_space<vmem>>, vector<16x32xbf16>,
    } else {
    }
    return
  }
  func.func @transform_0(%arg0: i32, %arg1: i32) -> (i32, i32) {
    %c0_i32 = arith.constant 0 : i32
    return %arg0, %arg1 : i32, i32
  }
  func.func @transform_1(%arg0: i32, %arg1: i32) -> (i32, i32) {
    %c0_i32 = arith.constant 0 : i32
    %c0_i32_0 = arith.constant 0 : i32
    return %arg1, %c0_i32 : i32, i32
  }
  func.func @transform_2(%arg0: i32, %arg1: i32) -> (i32, i32) {
    %c0_i32 = arith.constant 0 : i32
    %c0_i32_0 = arith.constant 0 : i32
    %c0_i32_1 = arith.constant 0 : i32
    return %c0_i32, %c0_i32_0 : i32, i32
  }
  func.func @transform_3(%arg0: i32, %arg1: i32) -> (i32, i32) {
    %c0_i32 = arith.constant 0 : i32
    %c0_i32_0 = arith.constant 0 : i32
    return %arg0, %c0_i32 : i32, i32
  }
  func.func @transform_4(%arg0: i32, %arg1: i32) -> (i32, i32) {
    %c0_i32 = arith.constant 0 : i32
    %c0_i32_0 = arith.constant 0 : i32
    %c0_i32_1 = arith.constant 0 : i32
    return %c0_i32, %c0_i32_0 : i32, i32
  }
  func.func @transform_5(%arg0: i32, %arg1: i32) -> (i32, i32) {
    %c0_i32 = arith.constant 0 : i32
    %c0_i32_0 = arith.constant 0 : i32
    %c0_i32_1 = arith.constant 0 : i32
    return %c0_i32, %c0_i32_0 : i32, i32
  }
  func.func @transform_6(%arg0: i32, %arg1: i32) -> (i32, i32) {
    %c0_i32 = arith.constant 0 : i32
    %c0_i32_0 = arith.constant 0 : i32
    return %arg0, %c0_i32 : i32, i32
  }
}

module attributes {stable_mosaic.version = 11 : i64} {
  func.func @_dense_ln_kernel(%arg0: i32, %arg1: i32, %arg2: memref<2x32xbf16, #tpu.memory_space<vmem>>, %arg3: memref<32x128xbf16, #tpu.memory_space<vmem>>, %arg4: memref<1x128xf32, #tpu.memory_space<vmem>>, %arg5: memref<1x128xf32, #tpu.memory_space<vmem>>, %arg6: memref<1x128xf32, #tpu.memory_space<vmem>>, %arg7: memref<2x128xf32, #tpu.memory_space<vmem>>, %arg8: memref<2x128xf32, #tpu.memory_space<vmem>>) attributes {dimension_semantics = [#tpu.dimension_semantics<parallel>, #tpu.dimension_semantics<arbitrary>], iteration_bounds = array<i64: 1, 1>, scalar_prefetch = 0 : i64, scratch_operands = 1 : i64, tpu.core_type = #tpu.core_type<tc>, window_params = [{transform_indices = @transform_0, window_bounds = array<i64: 2, 32>}, {transform_indices = @transform_1, window_bounds = array<i64: 32, 128>}, {pipeline_mode = #tpu.pipeline_mode<synchronous>, transform_indices = @transform_2, window_bounds = array<i64: 1, 128>}, {pipeline_mode = #tpu.pipeline_mode<synchronous>, transform_indices = @transform_3, window_bounds = array<i64: 1, 128>}, {pipeline_mode = #tpu.pipeline_mode<synchronous>, transform_indices = @transform_4, window_bounds = array<i64: 1, 128>}, {transform_indices = @transform_5, window_bounds = array<i64: 2, 128>}]} {
    %c0_i32 = arith.constant 0 : i32
    %0 = arith.cmpi eq, %arg1, %c0_i32 : i32
    %1 = arith.extui %0 : i1 to i32
    %c0_i32_0 = arith.constant 0 : i32
    %2 = arith.cmpi ne, %1, %c0_i32_0 : i32
    scf.if %2 {
      %cst_10 = arith.constant 0.000000e+00 : f32
      %12 = vector.broadcast %cst_10 : f32 to vector<2x128xf32>
      %c0_11 = arith.constant 0 : index
      %c0_12 = arith.constant 0 : index
      %13 = vector.load %arg8[%c0_11, %c0_12] : memref<2x128xf32, #tpu.memory_space<vmem>>, vector<2x128xf32>
      tpu.vector_store %arg8[%c0_11, %c0_12], %12 {strides = array<i32>} : memref<2x128xf32, #tpu.memory_space<vmem>>, vector<2x128xf32>,
    } else {
    }
    %c0 = arith.constant 0 : index
    %c0_1 = arith.constant 0 : index
    %3 = vector.load %arg8[%c0, %c0_1] : memref<2x128xf32, #tpu.memory_space<vmem>>, vector<2x128xf32>
    %c0_2 = arith.constant 0 : index
    %c0_3 = arith.constant 0 : index
    %4 = vector.load %arg2[%c0_2, %c0_3] : memref<2x32xbf16, #tpu.memory_space<vmem>>, vector<2x32xbf16>
    %c0_4 = arith.constant 0 : index
    %c0_5 = arith.constant 0 : index
    %5 = vector.load %arg3[%c0_4, %c0_5] : memref<32x128xbf16, #tpu.memory_space<vmem>>, vector<32x128xbf16>
    %cst = arith.constant dense<0.000000e+00> : vector<2x128xf32>
    %6 = tpu.matmul %4, %5, %cst {dimension_numbers = #tpu.dot_dimension_numbers<[1], [0], [0], [1], [0, 0, 1, 1], [], []>} : vector<2x32xbf16>, vector<32x128xbf16>, vector<2x128xf32> -> vector<2x128xf32>
    %7 = arith.addf %3, %6 : vector<2x128xf32>
    %c0_6 = arith.constant 0 : index
    %c0_7 = arith.constant 0 : index
    %8 = vector.load %arg8[%c0_6, %c0_7] : memref<2x128xf32, #tpu.memory_space<vmem>>, vector<2x128xf32>
    tpu.vector_store %arg8[%c0_6, %c0_7], %7 {strides = array<i32>} : memref<2x128xf32, #tpu.memory_space<vmem>>, vector<2x128xf32>,
    %c0_i32_8 = arith.constant 0 : i32
    %9 = arith.cmpi eq, %arg1, %c0_i32_8 : i32
    %10 = arith.extui %9 : i1 to i32
    %c0_i32_9 = arith.constant 0 : i32
    %11 = arith.cmpi ne, %10, %c0_i32_9 : i32
    scf.if %11 {
      %c0_10 = arith.constant 0 : index
      %c0_11 = arith.constant 0 : index
      %12 = vector.load %arg8[%c0_10, %c0_11] : memref<2x128xf32, #tpu.memory_space<vmem>>, vector<2x128xf32>
      %c0_12 = arith.constant 0 : index
      %c0_13 = arith.constant 0 : index
      %13 = vector.load %arg4[%c0_12, %c0_13] : memref<1x128xf32, #tpu.memory_space<vmem>>, vector<1x128xf32>
      %14 = vector.broadcast %13 : vector<1x128xf32> to vector<2x128xf32>
      %15 = arith.addf %12, %14 : vector<2x128xf32>
      %16 = tpu.iota {dimensions = array<i32: 1>} : vector<2x128xi32>
      %c16_i32 = arith.constant 16 : i32
      %17 = vector.broadcast %c16_i32 : i32 to vector<2x128xi32>
      %18 = arith.cmpi slt, %16, %17 : vector<2x128xi32>
      %cst_14 = arith.constant 0.000000e+00 : f32
      %19 = vector.broadcast %cst_14 : f32 to vector<2x128xf32>
      %20 = arith.select %18, %15, %19 : vector<2x128xi1>, vector<2x128xf32>
      %cst_15 = arith.constant dense<0.000000e+00> : vector<2xf32>
      %21 = vector.multi_reduction <add>, %20, %cst_15 [1] : vector<2x128xf32> to vector<2xf32>
      %22 = vector.shape_cast %21 : vector<2xf32> to vector<2x1xf32>
      %cst_16 = arith.constant 1.600000e+01 : f32
      %23 = vector.broadcast %cst_16 : f32 to vector<2x1xf32>
      %24 = arith.divf %22, %23 : vector<2x1xf32>
      %25 = arith.mulf %20, %20 : vector<2x128xf32>
      %cst_17 = arith.constant dense<0.000000e+00> : vector<2xf32>
      %26 = vector.multi_reduction <add>, %25, %cst_17 [1] : vector<2x128xf32> to vector<2xf32>
      %27 = vector.shape_cast %26 : vector<2xf32> to vector<2x1xf32>
      %cst_18 = arith.constant 1.600000e+01 : f32
      %28 = vector.broadcast %cst_18 : f32 to vector<2x1xf32>
      %29 = arith.divf %27, %28 : vector<2x1xf32>
      %30 = arith.mulf %24, %24 : vector<2x1xf32>
      %31 = arith.subf %29, %30 : vector<2x1xf32>
      %cst_19 = arith.constant 0.000000e+00 : f32
      %32 = vector.broadcast %cst_19 : f32 to vector<2x1xf32>
      %33 = arith.maximumf %31, %32 : vector<2x1xf32>
      %34 = vector.broadcast %24 : vector<2x1xf32> to vector<2x128xf32>
      %35 = arith.subf %20, %34 : vector<2x128xf32>
      %cst_20 = arith.constant 9.99999974E-6 : f32
      %36 = vector.broadcast %cst_20 : f32 to vector<2x1xf32>
      %37 = arith.addf %33, %36 : vector<2x1xf32>
      %38 = math.rsqrt %37 : vector<2x1xf32>
      %39 = vector.broadcast %38 : vector<2x1xf32> to vector<2x128xf32>
      %40 = arith.mulf %35, %39 : vector<2x128xf32>
      %c0_21 = arith.constant 0 : index
      %c0_22 = arith.constant 0 : index
      %41 = vector.load %arg5[%c0_21, %c0_22] : memref<1x128xf32, #tpu.memory_space<vmem>>, vector<1x128xf32>
      %42 = vector.broadcast %41 : vector<1x128xf32> to vector<2x128xf32>
      %43 = arith.mulf %40, %42 : vector<2x128xf32>
      %c0_23 = arith.constant 0 : index
      %c0_24 = arith.constant 0 : index
      %44 = vector.load %arg6[%c0_23, %c0_24] : memref<1x128xf32, #tpu.memory_space<vmem>>, vector<1x128xf32>
      %45 = vector.broadcast %44 : vector<1x128xf32> to vector<2x128xf32>
      %46 = arith.addf %43, %45 : vector<2x128xf32>
      %c0_25 = arith.constant 0 : index
      %c0_26 = arith.constant 0 : index
      %47 = vector.load %arg7[%c0_25, %c0_26] : memref<2x128xf32, #tpu.memory_space<vmem>>, vector<2x128xf32>
      tpu.vector_store %arg7[%c0_25, %c0_26], %46 {strides = array<i32>} : memref<2x128xf32, #tpu.memory_space<vmem>>, vector<2x128xf32>,
    } else {
    }
    return
  }
  func.func @transform_0(%arg0: i32, %arg1: i32) -> (i32, i32) {
    %c0_i32 = arith.constant 0 : i32
    return %arg0, %arg1 : i32, i32
  }
  func.func @transform_1(%arg0: i32, %arg1: i32) -> (i32, i32) {
    %c0_i32 = arith.constant 0 : i32
    %c0_i32_0 = arith.constant 0 : i32
    return %arg1, %c0_i32 : i32, i32
  }
  func.func @transform_2(%arg0: i32, %arg1: i32) -> (i32, i32) {
    %c0_i32 = arith.constant 0 : i32
    %c0_i32_0 = arith.constant 0 : i32
    %c0_i32_1 = arith.constant 0 : i32
    return %c0_i32, %c0_i32_0 : i32, i32
  }
  func.func @transform_3(%arg0: i32, %arg1: i32) -> (i32, i32) {
    %c0_i32 = arith.constant 0 : i32
    %c0_i32_0 = arith.constant 0 : i32
    %c0_i32_1 = arith.constant 0 : i32
    return %c0_i32, %c0_i32_0 : i32, i32
  }
  func.func @transform_4(%arg0: i32, %arg1: i32) -> (i32, i32) {
    %c0_i32 = arith.constant 0 : i32
    %c0_i32_0 = arith.constant 0 : i32
    %c0_i32_1 = arith.constant 0 : i32
    return %c0_i32, %c0_i32_0 : i32, i32
  }
  func.func @transform_5(%arg0: i32, %arg1: i32) -> (i32, i32) {
    %c0_i32 = arith.constant 0 : i32
    %c0_i32_0 = arith.constant 0 : i32
    return %arg0, %c0_i32 : i32, i32
  }
}

</mosaic_0001>

<llo_original>
// kernel: text_encoder_forward.13
$region0: #{text_encoder_forward.13}
  #allocation0 [shape = 'u32[]', space=smem, size = 0x4, offset = 0x4, fixed_abs, tag = 'smem constant byte address 0x4 - core index']
  #allocation1 [shape = 'u32[72,128]{1,0:T(1,128)}', space=vmem, size = 0x9000, scoped, tag = 'internal scratch']
  #allocation2 [shape = 'f32[16,96]{1,0:T(8,128)}', space=vmem, size = 0x2000, scoped, tag = 'scratch operand']
  %s0 = inlined_call_operand.vmem [shape: bf16[16,32], index: 0, kind: input, shape index: {}]
  %s1 = inlined_call_operand.vmem [shape: bf16[32,96], index: 1, kind: input, shape index: {}]
  %s2 = inlined_call_operand.vmem [shape: f32[1,96], index: 2, kind: input, shape index: {}]
  %s3 = inlined_call_operand.vmem [shape: bf16[16,96], index: 3, kind: output, shape index: {}]
  %s4 = sld [smem:[#allocation0]]
  $region30: #{text_encoder_forward.13} parent=0
    _
  %s6 = ssub.s32 1, %s4
  %s7 = scalar_select 0, %s6, %s4
  // Predicated region
  $region2: #{text_encoder_forward.13} parent=0 // pred_check
    _
  $region3: #{text_encoder_forward.13} parent=0 // pred_check_branch
    %9 = sbr.rel (0) target = $region5
  $region4: #{text_encoder_forward.13} parent=0 // pred_region
    _
  $region5: #{text_encoder_forward.13} parent=0 // pred_fallthru
    _
  // Predicated region
  $region6: #{text_encoder_forward.13} parent=0 // pred_check
    _
  $region7: #{text_encoder_forward.13} parent=0 // pred_check_branch
    %11 = sbr.rel (0) target = $region9
  $region8: #{text_encoder_forward.13} parent=0 // pred_region
    _
  $region9: #{text_encoder_forward.13} parent=0 // pred_fallthru
    _
  // Predicated region
  $region10: #{text_encoder_forward.13} parent=0 // pred_check
    _
  $region11: #{text_encoder_forward.13} parent=0 // pred_check_branch
    %13 = sbr.rel (0) target = $region13
  $region12: #{text_encoder_forward.13} parent=0 // pred_region
    _
  $region13: #{text_encoder_forward.13} parent=0 // pred_fallthru
    _
  %p15 = scmp.eq.s32.totalorder 0, 0
  // Predicated region
  $region14: #{text_encoder_forward.13} parent=0 // pred_check
    %p16 = pneg %p15
  $region15: #{text_encoder_forward.13} parent=0 // pred_check_branch
    %18 = sbr.rel (%p16) target = $region17
  $region16: #{text_encoder_forward.13} parent=0 // pred_region
    %vm19 = vcmask 785408
    %20 = vst.msk [vmem:[#allocation2] sm:$0xff] %vm19, 0.0
    %21 = vst.msk [vmem:[#allocation2 + $0x8] sm:$0xff] %vm19, 0.0
  $region17: #{text_encoder_forward.13} parent=0 // pred_fallthru
    _
  %v22 = vld [vmem:[#allocation2] sm:$0xff]
  %v23 = vld [vmem:[#allocation2 + $0x8] sm:$0xff]
  %v24 = vld [vmem:[%s0] sm:$0xf]
  %v25 = vld [vmem:[%s0 + $0x4] sm:$0xf]
  %v26 = vld [vmem:[%s1] sm:$0xf]
  %v27 = vld [vmem:[%s1 + $0x4] sm:$0xf]
  %v28 = vld [vmem:[%s1 + $0x8] sm:$0xf]
  %v29 = vld [vmem:[%s1 + $0xc] sm:$0xf]
  %v32 = vunpack.c.l.b16 %v24
  %v33 = vunpack.c.l.b16 %v25
  %v34 = vpack.c.b16 %v33, %v32
  %v39 = vunpack.c.l.b16 %v26
  %v40 = vunpack.c.l.b16 %v27
  %v41 = vunpack.c.l.b16 %v28
  %v42 = vunpack.c.l.b16 %v29
  %v43 = vpack.c.b16 %v40, %v39
  %v44 = vpack.c.b16 %v42, %v41
  %vm47 = vcmask 261120
  %v49 = vsel %vm47, %v34, 0
  %51 = vmatpush.bf16.msra.mxu0 0
  %52 = vmatpush.bf16.msra.mxu0 0
  %53 = vmatpush.bf16.msra.mxu0 0
  %54 = vmatpush.bf16.msra.mxu0 0
  %55 = vmatpush.bf16.msra.mxu0 0
  %56 = vmatpush.bf16.msra.mxu0 0
  %57 = vmatpush.bf16.msra.mxu0 %v44
  %58 = vmatpush.bf16.msra.mxu0 %v43
  %59 = vmatmul.bf16.gmra.mxu0 %v49
  %v60 = vpop.f32.mrf.mxu0
  %v61 = vadd.f32 0.0, %v60
  %v62 = vpop.f32.mrf.mxu0
  %v63 = vadd.f32 0.0, %v62
  %64 = vdwg.mxu0
  %v65 = vadd.f32 %v22, %v61
  %v66 = vadd.f32 %v23, %v63
  %vm67 = vcmask 785408
  %68 = vst.msk [vmem:[#allocation2] sm:$0xff] %vm67, %v65
  %69 = vst.msk [vmem:[#allocation2 + $0x8] sm:$0xff] %vm67, %v66
  // Predicated region
  $region18: #{text_encoder_forward.13} parent=0 // pred_check
    %p70 = pneg %p15
  $region19: #{text_encoder_forward.13} parent=0 // pred_check_branch
    %72 = sbr.rel (%p70) target = $region21
  $region20: #{text_encoder_forward.13} parent=0 // pred_region
    %v73 = vld [vmem:[#allocation2] sm:$0xff]
    %v74 = vld [vmem:[#allocation2 + $0x8] sm:$0xff]
    %v75 = vld [vmem:[%s2] sm:$0x1]
    %v77 = vperm.slane %v75, 0
    %v79 = vadd.f32 %v73, %v77
    %v80 = vadd.f32 %v74, %v77
    %v81 = vpack.c.bf16 %v79, %v79
    %v82 = vpack.c.bf16 %v80, %v80
    %vm83 = vcmask 781312
    %84 = vst.msk [vmem:[%s3] sm:$0xf] %vm83, %v81
    %85 = vst.msk [vmem:[%s3 + $0x4] sm:$0xf] %vm83, %v82
  $region21: #{text_encoder_forward.13} parent=0 // pred_fallthru
    _
  // Predicated region
  $region22: #{text_encoder_forward.13} parent=0 // pred_check
    _
  $region23: #{text_encoder_forward.13} parent=0 // pred_check_branch
    %87 = sbr.rel (0) target = $region25
  $region24: #{text_encoder_forward.13} parent=0 // pred_region
    _
  $region25: #{text_encoder_forward.13} parent=0 // pred_fallthru
    _
  // Predicated region
  $region26: #{text_encoder_forward.13} parent=0 // pred_check
    _
  $region27: #{text_encoder_forward.13} parent=0 // pred_check_branch
    %89 = sbr.rel (0) target = $region29
  $region28: #{text_encoder_forward.13} parent=0 // pred_region
    _
  $region29: #{text_encoder_forward.13} parent=0 // pred_fallthru
    _

// kernel: text_encoder_forward.12
$region0: #{text_encoder_forward.12}
  #allocation0 [shape = 'u32[]', space=smem, size = 0x4, offset = 0x4, fixed_abs, tag = 'smem constant byte address 0x4 - core index']
  #allocation1 [shape = 'u32[72,128]{1,0:T(1,128)}', space=vmem, size = 0x9000, scoped, tag = 'internal scratch']
  %s0 = inlined_call_operand.vmem [shape: f32[16,32], index: 0, kind: input, shape index: {}]
  %s1 = inlined_call_operand.vmem [shape: f32[1,32], index: 1, kind: input, shape index: {}]
  %s2 = inlined_call_operand.vmem [shape: f32[1,32], index: 2, kind: input, shape index: {}]
  %s3 = inlined_call_operand.vmem [shape: bf16[16,32], index: 3, kind: output, shape index: {}]
  %s4 = sld [smem:[#allocation0]]
  $region22: #{text_encoder_forward.12} parent=0
    _
  %s6 = ssub.s32 1, %s4
  %s7 = scalar_select 0, %s6, %s4
  // Predicated region
  $region2: #{text_encoder_forward.12} parent=0 // pred_check
    _
  $region3: #{text_encoder_forward.12} parent=0 // pred_check_branch
    %9 = sbr.rel (0) target = $region5
  $region4: #{text_encoder_forward.12} parent=0 // pred_region
    _
  $region5: #{text_encoder_forward.12} parent=0 // pred_fallthru
    _
  // Predicated region
  $region6: #{text_encoder_forward.12} parent=0 // pred_check
    _
  $region7: #{text_encoder_forward.12} parent=0 // pred_check_branch
    %11 = sbr.rel (0) target = $region9
  $region8: #{text_encoder_forward.12} parent=0 // pred_region
    _
  $region9: #{text_encoder_forward.12} parent=0 // pred_fallthru
    _
  // Predicated region
  $region10: #{text_encoder_forward.12} parent=0 // pred_check
    _
  $region11: #{text_encoder_forward.12} parent=0 // pred_check_branch
    %13 = sbr.rel (0) target = $region13
  $region12: #{text_encoder_forward.12} parent=0 // pred_region
    _
  $region13: #{text_encoder_forward.12} parent=0 // pred_fallthru
    _
  %v14 = vld [vmem:[%s0] sm:$0xff]
  %v15 = vld [vmem:[%s0 + $0x8] sm:$0xff]
  %vm16 = vcmask 261120
  %v17 = vsel %vm16, %v14, 0.0
  %18 = vadd.xlane.f32.xlu0 %v17
  %v19 = vpop.xlane.xlu0 %18
  %v20 = vsel %vm16, %v15, 0.0
  %21 = vadd.xlane.f32.xlu0 %v20
  %v22 = vpop.xlane.xlu0 %21
  %v23 = vrcp.pop 32.0
  %v24 = vmul.f32 32.0, %v23
  %v25 = vsub.f32 1.0, %v24
  %v26 = vmul.f32 %v23, %v25
  %v27 = vadd.f32 %v23, %v26
  %vm28 = vweird.f32 %v23
  %v29 = vsel %vm28, %v23, %v27
  %v30 = vmul.f32 %v19, %v29
  %v31 = vmul.f32 %v22, %v29
  %v32 = vmul.f32 %v14, %v14
  %v33 = vmul.f32 %v15, %v15
  %v34 = vsel %vm16, %v32, 0.0
  %35 = vadd.xlane.f32.xlu0 %v34
  %v36 = vpop.xlane.xlu0 %35
  %v37 = vsel %vm16, %v33, 0.0
  %38 = vadd.xlane.f32.xlu0 %v37
  %v39 = vpop.xlane.xlu0 %38
  %v40 = vmul.f32 %v36, %v29
  %v41 = vmul.f32 %v39, %v29
  %v42 = vmul.f32 %v30, %v30
  %v43 = vmul.f32 %v31, %v31
  %v44 = vsub.f32 %v40, %v42
  %v45 = vsub.f32 %v41, %v43
  %v46 = vmax.f32 %v44, 0.0
  %v47 = vmax.f32 %v45, 0.0
  %v48 = vsub.f32 %v14, %v30
  %v49 = vsub.f32 %v15, %v31
  %v50 = vadd.f32 %v46, 1e-12
  %v51 = vadd.f32 %v47, 1e-12
  %v52 = vrsqrt.pop %v50
  %v53 = vmul.f32 %v52, %v50
  %v54 = vmul.f32 %v53, %v52
  %v55 = vmul.f32 0.5, %v54
  %v56 = vsub.f32 1.5, %v55
  %v57 = vmul.f32 %v52, %v56
  %vm58 = vweird.f32 %v50
  %vm59 = vweird.f32 %v52
  %vm60 = vmor %vm58, %vm59
  %v61 = vsel %vm60, %v52, %v57
  %v62 = vrsqrt.pop %v51
  %v63 = vmul.f32 %v62, %v51
  %v64 = vmul.f32 %v63, %v62
  %v65 = vmul.f32 0.5, %v64
  %v66 = vsub.f32 1.5, %v65
  %v67 = vmul.f32 %v62, %v66
  %vm68 = vweird.f32 %v51
  %vm69 = vweird.f32 %v62
  %vm70 = vmor %vm68, %vm69
  %v71 = vsel %vm70, %v62, %v67
  %v72 = vmul.f32 %v48, %v61
  %v73 = vmul.f32 %v49, %v71
  %v74 = vld [vmem:[%s1] sm:$0x1]
  %v76 = vperm.slane %v74, 0
  %v78 = vmul.f32 %v72, %v76
  %v79 = vmul.f32 %v73, %v76
  %v80 = vld [vmem:[%s2] sm:$0x1]
  %v82 = vperm.slane %v80, 0
  %v84 = vadd.f32 %v78, %v82
  %v85 = vadd.f32 %v79, %v82
  %v86 = vpack.c.bf16 %v84, %v84
  %v87 = vpack.c.bf16 %v85, %v85
  %vm88 = vcmask 257024
  %89 = vst.msk [vmem:[%s3] sm:$0xf] %vm88, %v86
  %90 = vst.msk [vmem:[%s3 + $0x4] sm:$0xf] %vm88, %v87
  // Predicated region
  $region14: #{text_encoder_forward.12} parent=0 // pred_check
    _
  $region15: #{text_encoder_forward.12} parent=0 // pred_check_branch
    %92 = sbr.rel (0) target = $region17
  $region16: #{text_encoder_forward.12} parent=0 // pred_region
    _
  $region17: #{text_encoder_forward.12} parent=0 // pred_fallthru
    _
  // Predicated region
  $region18: #{text_encoder_forward.12} parent=0 // pred_check
    _
  $region19: #{text_encoder_forward.12} parent=0 // pred_check_branch
    %94 = sbr.rel (0) target = $region21
  $region20: #{text_encoder_forward.12} parent=0 // pred_region
    _
  $region21: #{text_encoder_forward.12} parent=0 // pred_fallthru
    _

// kernel: text_encoder_forward.14
$region0: #{text_encoder_forward.14}
  #allocation0 [shape = 'u32[]', space=smem, size = 0x4, offset = 0x4, fixed_abs, tag = 'smem constant byte address 0x4 - core index']
  #allocation1 [shape = 'u32[72,128]{1,0:T(1,128)}', space=vmem, size = 0x9000, scoped, tag = 'internal scratch']
  #allocation2 [shape = 'f32[8,1]{1,0:T(8,128)}', space=vmem, size = 0x1000, scoped, tag = 'scratch operand']
  #allocation3 [shape = 'f32[8,1]{1,0:T(8,128)}', space=vmem, size = 0x1000, scoped, tag = 'scratch operand']
  #allocation4 [shape = 'f32[8,8]{1,0:T(8,128)}', space=vmem, size = 0x1000, scoped, tag = 'scratch operand']
  %s0 = inlined_call_operand.vmem [shape: bf16[2,4,8,8], index: 0, kind: input, shape index: {}]
  %s1 = inlined_call_operand.vmem [shape: bf16[2,4,8,8], index: 1, kind: input, shape index: {}]
  %s2 = inlined_call_operand.vmem [shape: bf16[2,4,8,8], index: 2, kind: input, shape index: {}]
  %s3 = inlined_call_operand.vmem [shape: f32[2,1,8], index: 3, kind: input, shape index: {}]
  %s4 = inlined_call_operand.vmem [shape: bf16[2,4,8,8], index: 4, kind: output, shape index: {}]
  %s5 = sld [smem:[#allocation0]]
  $region57: #{text_encoder_forward.14} parent=0
    _
  %s7 = ssub.s32 1, %s5
  %s8 = scalar_select 0, %s7, %s5
  loop: start=0, step=1, limit=10
  $region2: #{text_encoder_forward.14} parent=0 // loop_pre_header
    _
  $region3: #{text_encoder_forward.14} parent=0 // loop_header
    %s10 = sphi 0, %s14
    %p11 = scmp.ge.s32.totalorder %s10, 10
    %s17 = sphi 0, %s43
    %s18 = sphi 0, %s39
    %s19 = sphi 0, %s35
    %s20 = sphi 0, %s31
    %s21 = sphi 0, %s17
    %s22 = sphi 0, %s18
    %s23 = sphi 0, %s19
    %s24 = sphi 0, %s20
    %s25 = sphi 0, %s21
    %s26 = sphi 0, %s22
    %s27 = sphi 0, %s23
    %s28 = sphi 0, %s24
    %s50 = sphi 0, %s52
    %s53 = sphi 0, %s50
    %s54 = sphi 0, %s53
    %s70 = sphi 0, %s54
    %s80 = sphi 0, %s82
    %s83 = sphi 0, %s80
    %s84 = sphi 0, %s83
    %s100 = sphi 0, %s84
    %s110 = sphi 0, %s112
    %s113 = sphi 0, %s110
    %s114 = sphi 0, %s113
    %s130 = sphi 0, %s114
    %s138 = sphi 0, %s140
    %s141 = sphi 0, %s138
    %s142 = sphi 0, %s141
    %s158 = sphi 0, %s142
    %s168 = sphi 0, %s170
    %s171 = sphi 0, %s168
    %s172 = sphi 0, %s171
    %s188 = sphi 0, %s172
  $region4: #{text_encoder_forward.14} parent=0 // loop_header_branch
    %13 = sbr.rel (%p11) target = $region8
  $region5: #{text_encoder_forward.14} parent=0 // loop_body
    %s15 = ssub.s32 %s10, 1
    %s16 = ssub.s32 %s10, 2
    %s29 = sadd.s32 1, %s20
    %p30 = scmp.ge.s32.totalorder %s29, 1
    %s31 = scalar_select %p30, 0, %s29
    %s32 = sadd.s32 1, %s19
    %s33 = scalar_select %p30, %s32, %s19
    %p34 = scmp.ge.s32.totalorder %s33, 1
    %s35 = scalar_select %p34, 0, %s33
    %s36 = sadd.s32 1, %s18
    %s37 = scalar_select %p34, %s36, %s18
    %p38 = scmp.ge.s32.totalorder %s37, 4
    %s39 = scalar_select %p38, 0, %s37
    %s40 = sadd.s32 1, %s17
    %s41 = scalar_select %p38, %s40, %s17
    %p42 = scmp.ge.s32.totalorder %s41, 2
    %s43 = scalar_select %p42, 0, %s41
    %s44 = ssub.s32 %s17, %s43
    %s45 = ssub.s32 %s18, %s39
    %s46 = sor.u32 %s44, %s45
    %s47 = ssub.s32 %s19, %s35
    %s48 = sor.u32 %s46, %s47
    %p49 = scmp.eq.s32.totalorder %s48, 0
    %s51 = sadd.s32 %s50, 1
    %s52 = scalar_select %p49, %s50, %s51
    %p55 = pneg %p49
    %p56 = scmp.eq.s32.totalorder %s10, 7
    %p57 = por %p55, %p56
    %p58 = scmp.ne.s32.totalorder %s50, %s53
    %p59 = scmp.eq.s32.totalorder %s10, 0
    %p60 = por %p58, %p59
    %p61 = scmp.ne.s32.totalorder %s50, %s53
    %p62 = scmp.eq.s32.totalorder %s15, 7
    %p63 = por %p61, %p62
    %p64 = scmp.ne.s32.totalorder %s53, %s54
    %p65 = scmp.eq.s32.totalorder %s15, 0
    %p66 = por %p64, %p65
    %p67 = scmp.ne.s32.totalorder %s53, %s54
    %p68 = scmp.eq.s32.totalorder %s16, 7
    %p69 = por %p67, %p68
    %p71 = scmp.ne.s32.totalorder %s54, %s70
    %p72 = scmp.eq.s32.totalorder %s16, 0
    %p73 = por %p71, %p72
    %s74 = ssub.s32 %s17, %s43
    %s75 = ssub.s32 %s18, %s39
    %s76 = sor.u32 %s74, %s75
    %s77 = ssub.s32 %s20, %s31
    %s78 = sor.u32 %s76, %s77
    %p79 = scmp.eq.s32.totalorder %s78, 0
    %s81 = sadd.s32 %s80, 1
    %s82 = scalar_select %p79, %s80, %s81
    %p85 = pneg %p79
    %p86 = scmp.eq.s32.totalorder %s10, 7
    %p87 = por %p85, %p86
    %p88 = scmp.ne.s32.totalorder %s80, %s83
    %p89 = scmp.eq.s32.totalorder %s10, 0
    %p90 = por %p88, %p89
    %p91 = scmp.ne.s32.totalorder %s80, %s83
    %p92 = scmp.eq.s32.totalorder %s15, 7
    %p93 = por %p91, %p92
    %p94 = scmp.ne.s32.totalorder %s83, %s84
    %p95 = scmp.eq.s32.totalorder %s15, 0
    %p96 = por %p94, %p95
    %p97 = scmp.ne.s32.totalorder %s83, %s84
    %p98 = scmp.eq.s32.totalorder %s16, 7
    %p99 = por %p97, %p98
    %p101 = scmp.ne.s32.totalorder %s84, %s100
    %p102 = scmp.eq.s32.totalorder %s16, 0
    %p103 = por %p101, %p102
    %s104 = ssub.s32 %s17, %s43
    %s105 = ssub.s32 %s18, %s39
    %s106 = sor.u32 %s104, %s105
    %s107 = ssub.s32 %s20, %s31
    %s108 = sor.u32 %s106, %s107
    %p109 = scmp.eq.s32.totalorder %s108, 0
    %s111 = sadd.s32 %s110, 1
    %s112 = scalar_select %p109, %s110, %s111
    %p115 = pneg %p109
    %p116 = scmp.eq.s32.totalorder %s10, 7
    %p117 = por %p115, %p116
    %p118 = scmp.ne.s32.totalorder %s110, %s113
    %p119 = scmp.eq.s32.totalorder %s10, 0
    %p120 = por %p118, %p119
    %p121 = scmp.ne.s32.totalorder %s110, %s113
    %p122 = scmp.eq.s32.totalorder %s15, 7
    %p123 = por %p121, %p122
    %p124 = scmp.ne.s32.totalorder %s113, %s114
    %p125 = scmp.eq.s32.totalorder %s15, 0
    %p126 = por %p124, %p125
    %p127 = scmp.ne.s32.totalorder %s113, %s114
    %p128 = scmp.eq.s32.totalorder %s16, 7
    %p129 = por %p127, %p128
    %p131 = scmp.ne.s32.totalorder %s114, %s130
    %p132 = scmp.eq.s32.totalorder %s16, 0
    %p133 = por %p131, %p132
    %s134 = ssub.s32 %s17, %s43
    %s135 = ssub.s32 %s20, %s31
    %s136 = sor.u32 %s134, %s135
    %p137 = scmp.eq.s32.totalorder %s136, 0
    %s139 = sadd.s32 %s138, 1
    %s140 = scalar_select %p137, %s138, %s139
    %p143 = pneg %p137
    %p144 = scmp.eq.s32.totalorder %s10, 7
    %p145 = por %p143, %p144
    %p146 = scmp.ne.s32.totalorder %s138, %s141
    %p147 = scmp.eq.s32.totalorder %s10, 0
    %p148 = por %p146, %p147
    %p149 = scmp.ne.s32.totalorder %s138, %s141
    %p150 = scmp.eq.s32.totalorder %s15, 7
    %p151 = por %p149, %p150
    %p152 = scmp.ne.s32.totalorder %s141, %s142
    %p153 = scmp.eq.s32.totalorder %s15, 0
    %p154 = por %p152, %p153
    %p155 = scmp.ne.s32.totalorder %s141, %s142
    %p156 = scmp.eq.s32.totalorder %s16, 7
    %p157 = por %p155, %p156
    %p159 = scmp.ne.s32.totalorder %s142, %s158
    %p160 = scmp.eq.s32.totalorder %s16, 0
    %p161 = por %p159, %p160
    %s162 = ssub.s32 %s17, %s43
    %s163 = ssub.s32 %s18, %s39
    %s164 = sor.u32 %s162, %s163
    %s165 = ssub.s32 %s19, %s35
    %s166 = sor.u32 %s164, %s165
    %p167 = scmp.eq.s32.totalorder %s166, 0
    %s169 = sadd.s32 %s168, 1
    %s170 = scalar_select %p167, %s168, %s169
    %p173 = pneg %p167
    %p174 = scmp.eq.s32.totalorder %s10, 7
    %p175 = por %p173, %p174
    %p176 = scmp.ne.s32.totalorder %s168, %s171
    %p177 = scmp.eq.s32.totalorder %s10, 0
    %p178 = por %p176, %p177
    %p179 = scmp.ne.s32.totalorder %s168, %s171
    %p180 = scmp.eq.s32.totalorder %s15, 7
    %p181 = por %p179, %p180
    %p182 = scmp.ne.s32.totalorder %s171, %s172
    %p183 = scmp.eq.s32.totalorder %s15, 0
    %p184 = por %p182, %p183
    %p185 = scmp.ne.s32.totalorder %s171, %s172
    %p186 = scmp.eq.s32.totalorder %s16, 7
    %p187 = por %p185, %p186
    %p189 = scmp.ne.s32.totalorder %s172, %s188
    %p190 = scmp.eq.s32.totalorder %s16, 0
    %p191 = por %p189, %p190
    %p192 = scmp.le.s32.totalorder 1, %s10
    %p193 = scmp.lt.s32.totalorder %s10, 9
    %p194 = pnand %p192, %p193
    %p195 = pneg %p194
    // Predicated region
    $region9: #{text_encoder_forward.14} parent=5 // pred_check
      _
    $region10: #{text_encoder_forward.14} parent=5 // pred_check_branch
      %197 = sbr.rel (%p194) target = $region12
    $region11: #{text_encoder_forward.14} parent=5 // pred_region
      %s198 = ssub.s32 %s10, 1
    $region12: #{text_encoder_forward.14} parent=5 // pred_fallthru
      _
    %p199 = scmp.lt.s32.totalorder %s10, 8
    // Predicated region
    $region13: #{text_encoder_forward.14} parent=5 // pred_check
      %p200 = pneg %p199
    $region14: #{text_encoder_forward.14} parent=5 // pred_check_branch
      %202 = sbr.rel (%p200) target = $region16
    $region15: #{text_encoder_forward.14} parent=5 // pred_region
      // Predicated region
      $region17: #{text_encoder_forward.14} parent=15 // pred_check
        %p203 = pneg %p60
      $region18: #{text_encoder_forward.14} parent=15 // pred_check_branch
        %205 = sbr.rel (%p203) target = $region20
      $region19: #{text_encoder_forward.14} parent=15 // pred_region
        %p206 = scmp.lt.s32.totalorder %s17, 1
        %s207 = scalar_select %p206, %s17, 1
        %p208 = scmp.lt.s32.totalorder %s18, 3
        %s209 = scalar_select %p208, %s18, 3
        %p210 = scmp.lt.s32.totalorder %s19, 0
        %s211 = scalar_select %p210, %s19, 0
        %s212 = sadd.s32 %s211, %s209
        %s213 = smul.addr %s207, 4
        %s214 = sadd.s32 %s212, %s213
        %s215 = smul.addr %s214, 4
        %s216 = scalar_lea.vmem %s0, %s215
      $region20: #{text_encoder_forward.14} parent=15 // pred_fallthru
        _
      // Predicated region
      $region21: #{text_encoder_forward.14} parent=15 // pred_check
        %p217 = pneg %p90
      $region22: #{text_encoder_forward.14} parent=15 // pred_check_branch
        %219 = sbr.rel (%p217) target = $region24
      $region23: #{text_encoder_forward.14} parent=15 // pred_region
        %p220 = scmp.lt.s32.totalorder %s17, 1
        %s221 = scalar_select %p220, %s17, 1
        %p222 = scmp.lt.s32.totalorder %s18, 3
        %s223 = scalar_select %p222, %s18, 3
        %p224 = scmp.lt.s32.totalorder %s20, 0
        %s225 = scalar_select %p224, %s20, 0
        %s226 = sadd.s32 %s225, %s223
        %s227 = smul.addr %s221, 4
        %s228 = sadd.s32 %s226, %s227
        %s229 = smul.addr %s228, 4
        %s230 = scalar_lea.vmem %s1, %s229
      $region24: #{text_encoder_forward.14} parent=15 // pred_fallthru
        _
      // Predicated region
      $region25: #{text_encoder_forward.14} parent=15 // pred_check
        %p231 = pneg %p120
      $region26: #{text_encoder_forward.14} parent=15 // pred_check_branch
        %233 = sbr.rel (%p231) target = $region28
      $region27: #{text_encoder_forward.14} parent=15 // pred_region
        %p234 = scmp.lt.s32.totalorder %s17, 1
        %s235 = scalar_select %p234, %s17, 1
        %p236 = scmp.lt.s32.totalorder %s18, 3
        %s237 = scalar_select %p236, %s18, 3
        %p238 = scmp.lt.s32.totalorder %s20, 0
        %s239 = scalar_select %p238, %s20, 0
        %s240 = sadd.s32 %s239, %s237
        %s241 = smul.addr %s235, 4
        %s242 = sadd.s32 %s240, %s241
        %s243 = smul.addr %s242, 4
        %s244 = scalar_lea.vmem %s2, %s243
      $region28: #{text_encoder_forward.14} parent=15 // pred_fallthru
        _
      // Predicated region
      $region29: #{text_encoder_forward.14} parent=15 // pred_check
        %p245 = pneg %p148
      $region30: #{text_encoder_forward.14} parent=15 // pred_check_branch
        %247 = sbr.rel (%p245) target = $region32
      $region31: #{text_encoder_forward.14} parent=15 // pred_region
        %p248 = scmp.lt.s32.totalorder %s17, 1
        %s249 = scalar_select %p248, %s17, 1
        %p250 = scmp.lt.s32.totalorder %s20, 0
        %s251 = scalar_select %p250, %s20, 0
        %s252 = sadd.s32 %s251, %s249
        %s253 = scalar_lea.vmem %s3, %s252
      $region32: #{text_encoder_forward.14} parent=15 // pred_fallthru
        _
    $region16: #{text_encoder_forward.14} parent=5 // pred_fallthru
      _
    %p254 = scmp.le.s32.totalorder 1, %s10
    %p255 = scmp.lt.s32.totalorder %s10, 9
    %p256 = pnand %p254, %p255
    %p257 = pneg %p256
    // Predicated region
    $region33: #{text_encoder_forward.14} parent=5 // pred_check
      _
    $region34: #{text_encoder_forward.14} parent=5 // pred_check_branch
      %259 = sbr.rel (%p256) target = $region36
    $region35: #{text_encoder_forward.14} parent=5 // pred_region
      %s260 = ssub.s32 %s10, 1
      %p261 = scmp.lt.s32.totalorder %s21, 1
      %s262 = scalar_select %p261, %s21, 1
      %p263 = scmp.lt.s32.totalorder %s22, 3
      %s264 = scalar_select %p263, %s22, 3
      %p265 = scmp.lt.s32.totalorder %s23, 0
      %s266 = scalar_select %p265, %s23, 0
      %s267 = sadd.s32 %s266, %s264
      %s268 = smul.addr %s262, 4
      %s269 = sadd.s32 %s267, %s268
      %s270 = smul.addr %s269, 4
      %s271 = scalar_lea.vmem %s0, %s270
      %p272 = pneg %p66
      %p273 = pneg %p63
      %p274 = scmp.lt.s32.totalorder %s21, 1
      %s275 = scalar_select %p274, %s21, 1
      %p276 = scmp.lt.s32.totalorder %s22, 3
      %s277 = scalar_select %p276, %s22, 3
      %p278 = scmp.lt.s32.totalorder %s24, 0
      %s279 = scalar_select %p278, %s24, 0
      %s280 = sadd.s32 %s279, %s277
      %s281 = smul.addr %s275, 4
      %s282 = sadd.s32 %s280, %s281
      %s283 = smul.addr %s282, 4
      %s284 = scalar_lea.vmem %s1, %s283
      %p285 = pneg %p96
      %p286 = pneg %p93
      %p287 = scmp.lt.s32.totalorder %s21, 1
      %s288 = scalar_select %p287, %s21, 1
      %p289 = scmp.lt.s32.totalorder %s22, 3
      %s290 = scalar_select %p289, %s22, 3
      %p291 = scmp.lt.s32.totalorder %s24, 0
      %s292 = scalar_select %p291, %s24, 0
      %s293 = sadd.s32 %s292, %s290
      %s294 = smul.addr %s288, 4
      %s295 = sadd.s32 %s293, %s294
      %s296 = smul.addr %s295, 4
      %s297 = scalar_lea.vmem %s2, %s296
      %p298 = pneg %p126
      %p299 = pneg %p123
      %p300 = scmp.lt.s32.totalorder %s21, 1
      %s301 = scalar_select %p300, %s21, 1
      %p302 = scmp.lt.s32.totalorder %s24, 0
      %s303 = scalar_select %p302, %s24, 0
      %s304 = sadd.s32 %s303, %s301
      %s305 = scalar_lea.vmem %s3, %s304
      %p306 = pneg %p154
      %p307 = pneg %p151
      %p308 = pneg %p184
      %p309 = pneg %p181
      %p310 = scmp.lt.s32.totalorder %s21, 1
      %s311 = scalar_select %p310, %s21, 1
      %p312 = scmp.lt.s32.totalorder %s22, 3
      %s313 = scalar_select %p312, %s22, 3
      %p314 = scmp.lt.s32.totalorder %s23, 0
      %s315 = scalar_select %p314, %s23, 0
      %s316 = sadd.s32 %s315, %s313
      %s317 = smul.addr %s311, 4
      %s318 = sadd.s32 %s316, %s317
      %s319 = smul.addr %s318, 4
      %s320 = scalar_lea.vmem %s4, %s319
      %p321 = scmp.lt.s32.totalorder %s21, 1
      %s322 = scalar_select %p321, %s21, 1
      %p323 = scmp.lt.s32.totalorder %s22, 3
      %s324 = scalar_select %p323, %s22, 3
      %p325 = scmp.lt.s32.totalorder %s23, 0
      %s326 = scalar_select %p325, %s23, 0
      %s327 = sadd.s32 %s326, %s324
      %s328 = smul.addr %s322, 4
      %s329 = sadd.s32 %s327, %s328
      %s330 = smul.addr %s329, 4
      %s331 = scalar_lea.vmem %s0, %s330
      %p332 = scmp.lt.s32.totalorder %s21, 1
      %s333 = scalar_select %p332, %s21, 1
      %p334 = scmp.lt.s32.totalorder %s22, 3
      %s335 = scalar_select %p334, %s22, 3
      %p336 = scmp.lt.s32.totalorder %s24, 0
      %s337 = scalar_select %p336, %s24, 0
      %s338 = sadd.s32 %s337, %s335
      %s339 = smul.addr %s333, 4
      %s340 = sadd.s32 %s338, %s339
      %s341 = smul.addr %s340, 4
      %s342 = scalar_lea.vmem %s1, %s341
      %p343 = scmp.lt.s32.totalorder %s21, 1
      %s344 = scalar_select %p343, %s21, 1
      %p345 = scmp.lt.s32.totalorder %s22, 3
      %s346 = scalar_select %p345, %s22, 3
      %p347 = scmp.lt.s32.totalorder %s24, 0
      %s348 = scalar_select %p347, %s24, 0
      %s349 = sadd.s32 %s348, %s346
      %s350 = smul.addr %s344, 4
      %s351 = sadd.s32 %s349, %s350
      %s352 = smul.addr %s351, 4
      %s353 = scalar_lea.vmem %s2, %s352
      %p354 = scmp.lt.s32.totalorder %s21, 1
      %s355 = scalar_select %p354, %s21, 1
      %p356 = scmp.lt.s32.totalorder %s24, 0
      %s357 = scalar_select %p356, %s24, 0
      %s358 = sadd.s32 %s357, %s355
      %s359 = scalar_lea.vmem %s3, %s358
      %p360 = scmp.lt.s32.totalorder %s21, 1
      %s361 = scalar_select %p360, %s21, 1
      %p362 = scmp.lt.s32.totalorder %s22, 3
      %s363 = scalar_select %p362, %s22, 3
      %p364 = scmp.lt.s32.totalorder %s23, 0
      %s365 = scalar_select %p364, %s23, 0
      %s366 = sadd.s32 %s365, %s363
      %s367 = smul.addr %s361, 4
      %s368 = sadd.s32 %s366, %s367
      %s369 = smul.addr %s368, 4
      %s370 = scalar_lea.vmem %s4, %s369
      %p372 = scmp.eq.s32.totalorder %s24, 0
      // Predicated region
      $region37: #{text_encoder_forward.14} parent=35 // pred_check
        %p373 = pneg %p372
      $region38: #{text_encoder_forward.14} parent=35 // pred_check_branch
        %375 = sbr.rel (%p373) target = $region40
      $region39: #{text_encoder_forward.14} parent=35 // pred_region
        %vm376 = vcmask 7168
        %377 = vst.msk [vmem:[#allocation2] sm:$0xff] %vm376, -inf
        %378 = vst.msk [vmem:[#allocation3] sm:$0xff] %vm376, 0.0
        %vm379 = vcmask 64512
        %380 = vst.msk [vmem:[#allocation4] sm:$0xff] %vm379, 0.0
      $region40: #{text_encoder_forward.14} parent=35 // pred_fallthru
        _
      %v381 = vld [vmem:[%s331] sm:$0xf]
      %v382 = vld [vmem:[%s342] sm:$0xf]
      %v383 = vld [vmem:[%s353] sm:$0xf]
      %v384 = vld [vmem:[%s359] sm:$0x1]
      %vm385 = vcmask 64512
      %v387 = vsel %vm385, %v381, 0
      %vm389 = vcmask 1043456
      %v391 = vsel %vm389, %v382, 0
      %393 = vmatpush.bf16.msra.mxu0 0
      %394 = vmatpush.bf16.msra.mxu0 0
      %395 = vmatpush.bf16.msra.mxu0 0
      %396 = vmatpush.bf16.msra.mxu0 0
      %397 = vmatpush.bf16.msra.mxu0 0
      %398 = vmatpush.bf16.msra.mxu0 0
      %399 = vmatpush.bf16.msra.mxu0 0
      %400 = vmatpush.bf16.msra.mxu0 %v391
      %401 = vmatmul.bf16.gmra.mxu0 %v387
      %v402 = vpop.f32.mrf.mxu0
      %v403 = vadd.f32 0.0, %v402
      %v404 = vpop.f32.mrf.mxu0
      %405 = vdwg.mxu0
      %v406 = vmul.f32 %v403, 0.35355338
      %v408 = vperm.slane %v384, 0
      %v410 = vadd.f32 %v406, %v408
      %v411 = vld [vmem:[#allocation2] sm:$0xff]
      %v412 = vsel %vm385, %v410, -inf
      %413 = vmax.xlane.f32.xlu0 %v412
      %v414 = vpop.xlane.xlu0 %413
      %v415 = vmax.f32 %v411, %v414
      %v416 = vsub.f32 %v411, %v415
      %v417 = vmul.f32 %v416, 1.442695
      %v418 = vpow.pop %v417
      %420 = vset.pattern.permute.xlu0 0
      %421 = vperm.xlu0 %420, %v415
      %v422 = vpop.permute.xlu0 %421
      %v424 = vsub.f32 %v410, %v422
      %v425 = vmul.f32 %v424, 1.442695
      %v426 = vpow.pop %v425
      %v427 = vld [vmem:[#allocation3] sm:$0xff]
      %v428 = vmul.f32 %v418, %v427
      %v429 = vsel %vm385, %v426, 0.0
      %430 = vadd.xlane.f32.xlu0 %v429
      %v431 = vpop.xlane.xlu0 %430
      %v432 = vadd.f32 %v428, %v431
      %vm433 = vcmask 7168
      %434 = vst.msk [vmem:[#allocation3] sm:$0xff] %vm433, %v432
      %v435 = vld [vmem:[#allocation4] sm:$0xff]
      %437 = vset.pattern.permute.xlu0 0
      %438 = vperm.xlu0 %437, %v418
      %v439 = vpop.permute.xlu0 %438
      %v441 = vmul.f32 %v439, %v435
      %v442 = vpack.c.bf16 %v426, %v426
      %v444 = vsel %vm385, %v442, 0
      %v447 = vsel %vm389, %v383, 0
      %449 = vmatpush.bf16.msra.mxu0 0
      %450 = vmatpush.bf16.msra.mxu0 0
      %451 = vmatpush.bf16.msra.mxu0 0
      %452 = vmatpush.bf16.msra.mxu0 0
      %453 = vmatpush.bf16.msra.mxu0 0
      %454 = vmatpush.bf16.msra.mxu0 0
      %455 = vmatpush.bf16.msra.mxu0 0
      %456 = vmatpush.bf16.msra.mxu0 %v447
      %457 = vmatmul.bf16.gmra.mxu0 %v444
      %v458 = vpop.f32.mrf.mxu0
      %v459 = vadd.f32 0.0, %v458
      %v460 = vpop.f32.mrf.mxu0
      %461 = vdwg.mxu0
      %v462 = vadd.f32 %v441, %v459
      %463 = vst.msk [vmem:[#allocation4] sm:$0xff] %vm385, %v462
      %464 = vst.msk [vmem:[#allocation2] sm:$0xff] %vm433, %v415
      // Predicated region
      $region41: #{text_encoder_forward.14} parent=35 // pred_check
        %p465 = pneg %p372
      $region42: #{text_encoder_forward.14} parent=35 // pred_check_branch
        %467 = sbr.rel (%p465) target = $region44
      $region43: #{text_encoder_forward.14} parent=35 // pred_region
        %v468 = vld [vmem:[#allocation4] sm:$0xff]
        %v469 = vld [vmem:[#allocation3] sm:$0xff]
        %471 = vset.pattern.permute.xlu0 0
        %472 = vperm.xlu0 %471, %v469
        %v473 = vpop.permute.xlu0 %472
        %v475 = vrcp.pop %v473
        %v476 = vmul.f32 %v473, %v475
        %v477 = vsub.f32 1.0, %v476
        %v478 = vmul.f32 %v475, %v477
        %v479 = vadd.f32 %v475, %v478
        %vm480 = vweird.f32 %v473
        %vm481 = vweird.f32 %v475
        %vm482 = vmor %vm480, %vm481
        %v483 = vsel %vm482, %v475, %v479
        %v484 = vand.u32 2147483647, %v473
        %vm485 = vcmp.eq.f32.partialorder %v484, 8.507059e+37
        %v486 = vand.u32 %v473, 2147483648
        %v487 = vor.u32 1.1754944e-38, %v486
        %v488 = vsel %vm485, %v487, %v483
        %v489 = vmul.f32 %v468, %v488
        %v490 = vpack.c.bf16 %v489, %v489
        %vm491 = vcmask 60416
        %492 = vst.msk [vmem:[%s370] sm:$0xf] %vm491, %v490
      $region44: #{text_encoder_forward.14} parent=35 // pred_fallthru
        _
      %p493 = scmp.lt.s32.totalorder %s21, 1
      %s494 = scalar_select %p493, %s21, 1
      %p495 = scmp.lt.s32.totalorder %s22, 3
      %s496 = scalar_select %p495, %s22, 3
      %p497 = scmp.lt.s32.totalorder %s23, 0
      %s498 = scalar_select %p497, %s23, 0
      %s499 = sadd.s32 %s498, %s496
      %s500 = smul.addr %s494, 4
      %s501 = sadd.s32 %s499, %s500
      %s502 = smul.addr %s501, 4
      %s503 = scalar_lea.vmem %s4, %s502
      // Predicated region
      $region45: #{text_encoder_forward.14} parent=35 // pred_check
        %p504 = pneg %p181
      $region46: #{text_encoder_forward.14} parent=35 // pred_check_branch
        %506 = sbr.rel (%p504) target = $region48
      $region47: #{text_encoder_forward.14} parent=35 // pred_region
        _
      $region48: #{text_encoder_forward.14} parent=35 // pred_fallthru
        _
    $region36: #{text_encoder_forward.14} parent=5 // pred_fallthru
      _
    %p507 = scmp.le.s32.totalorder 2, %s10
    // Predicated region
    $region49: #{text_encoder_forward.14} parent=5 // pred_check
      %p508 = pneg %p507
    $region50: #{text_encoder_forward.14} parent=5 // pred_check_branch
      %510 = sbr.rel (%p508) target = $region52
    $region51: #{text_encoder_forward.14} parent=5 // pred_region
      %s511 = ssub.s32 %s10, 2
      // Predicated region
      $region53: #{text_encoder_forward.14} parent=51 // pred_check
        %p512 = pneg %p187
      $region54: #{text_encoder_forward.14} parent=51 // pred_check_branch
        %514 = sbr.rel (%p512) target = $region56
      $region55: #{text_encoder_forward.14} parent=51 // pred_region
        %p515 = scmp.lt.s32.totalorder %s25, 1
        %s516 = scalar_select %p515, %s25, 1
        %p517 = scmp.lt.s32.totalorder %s26, 3
        %s518 = scalar_select %p517, %s26, 3
        %p519 = scmp.lt.s32.totalorder %s27, 0
        %s520 = scalar_select %p519, %s27, 0
        %s521 = sadd.s32 %s520, %s518
        %s522 = smul.addr %s516, 4
        %s523 = sadd.s32 %s521, %s522
        %s524 = smul.addr %s523, 4
        %s525 = scalar_lea.vmem %s4, %s524
      $region56: #{text_encoder_forward.14} parent=51 // pred_fallthru
        _
    $region52: #{text_encoder_forward.14} parent=5 // pred_fallthru
      _
  $region6: #{text_encoder_forward.14} parent=0 // loop_footer
    %s14 = sadd.s32 1, %s10
  $region7: #{text_encoder_forward.14} parent=0 // loop_footer_branch
    %9 = sbr.rel target = $region3
  $region8: #{text_encoder_forward.14} parent=0 // loop_exit
    _

// kernel: text_encoder_forward.15
$region0: #{text_encoder_forward.15}
  #allocation0 [shape = 'u32[]', space=smem, size = 0x4, offset = 0x4, fixed_abs, tag = 'smem constant byte address 0x4 - core index']
  #allocation1 [shape = 'u32[72,128]{1,0:T(1,128)}', space=vmem, size = 0x9000, scoped, tag = 'internal scratch']
  #allocation2 [shape = 'f32[16,32]{1,0:T(8,128)}', space=vmem, size = 0x2000, scoped, tag = 'scratch operand']
  %s0 = inlined_call_operand.vmem [shape: bf16[16,32], index: 0, kind: input, shape index: {}]
  %s1 = inlined_call_operand.vmem [shape: bf16[32,32], index: 1, kind: input, shape index: {}]
  %s2 = inlined_call_operand.vmem [shape: f32[1,32], index: 2, kind: input, shape index: {}]
  %s3 = inlined_call_operand.vmem [shape: bf16[16,32], index: 3, kind: input, shape index: {}]
  %s4 = inlined_call_operand.vmem [shape: f32[1,32], index: 4, kind: input, shape index: {}]
  %s5 = inlined_call_operand.vmem [shape: f32[1,32], index: 5, kind: input, shape index: {}]
  %s6 = inlined_call_operand.vmem [shape: bf16[16,32], index: 6, kind: output, shape index: {}]
  %s7 = sld [smem:[#allocation0]]
  $region42: #{text_encoder_forward.15} parent=0
    _
  %s9 = ssub.s32 1, %s7
  %s10 = scalar_select 0, %s9, %s7
  // Predicated region
  $region2: #{text_encoder_forward.15} parent=0 // pred_check
    _
  $region3: #{text_encoder_forward.15} parent=0 // pred_check_branch
    %12 = sbr.rel (0) target = $region5
  $region4: #{text_encoder_forward.15} parent=0 // pred_region
    _
  $region5: #{text_encoder_forward.15} parent=0 // pred_fallthru
    _
  // Predicated region
  $region6: #{text_encoder_forward.15} parent=0 // pred_check
    _
  $region7: #{text_encoder_forward.15} parent=0 // pred_check_branch
    %14 = sbr.rel (0) target = $region9
  $region8: #{text_encoder_forward.15} parent=0 // pred_region
    _
  $region9: #{text_encoder_forward.15} parent=0 // pred_fallthru
    _
  // Predicated region
  $region10: #{text_encoder_forward.15} parent=0 // pred_check
    _
  $region11: #{text_encoder_forward.15} parent=0 // pred_check_branch
    %16 = sbr.rel (0) target = $region13
  $region12: #{text_encoder_forward.15} parent=0 // pred_region
    _
  $region13: #{text_encoder_forward.15} parent=0 // pred_fallthru
    _
  // Predicated region
  $region14: #{text_encoder_forward.15} parent=0 // pred_check
    _
  $region15: #{text_encoder_forward.15} parent=0 // pred_check_branch
    %18 = sbr.rel (0) target = $region17
  $region16: #{text_encoder_forward.15} parent=0 // pred_region
    _
  $region17: #{text_encoder_forward.15} parent=0 // pred_fallthru
    _
  // Predicated region
  $region18: #{text_encoder_forward.15} parent=0 // pred_check
    _
  $region19: #{text_encoder_forward.15} parent=0 // pred_check_branch
    %20 = sbr.rel (0) target = $region21
  $region20: #{text_encoder_forward.15} parent=0 // pred_region
    _
  $region21: #{text_encoder_forward.15} parent=0 // pred_fallthru
    _
  // Predicated region
  $region22: #{text_encoder_forward.15} parent=0 // pred_check
    _
  $region23: #{text_encoder_forward.15} parent=0 // pred_check_branch
    %22 = sbr.rel (0) target = $region25
  $region24: #{text_encoder_forward.15} parent=0 // pred_region
    _
  $region25: #{text_encoder_forward.15} parent=0 // pred_fallthru
    _
  %p24 = scmp.eq.s32.totalorder 0, 0
  // Predicated region
  $region26: #{text_encoder_forward.15} parent=0 // pred_check
    %p25 = pneg %p24
  $region27: #{text_encoder_forward.15} parent=0 // pred_check_branch
    %27 = sbr.rel (%p25) target = $region29
  $region28: #{text_encoder_forward.15} parent=0 // pred_region
    %vm28 = vcmask 261120
    %29 = vst.msk [vmem:[#allocation2] sm:$0xff] %vm28, 0.0
    %30 = vst.msk [vmem:[#allocation2 + $0x8] sm:$0xff] %vm28, 0.0
  $region29: #{text_encoder_forward.15} parent=0 // pred_fallthru
    _
  %v31 = vld [vmem:[#allocation2] sm:$0xff]
  %v32 = vld [vmem:[#allocation2 + $0x8] sm:$0xff]
  %v33 = vld [vmem:[%s0] sm:$0xf]
  %v34 = vld [vmem:[%s0 + $0x4] sm:$0xf]
  %v35 = vld [vmem:[%s1] sm:$0xf]
  %v36 = vld [vmem:[%s1 + $0x4] sm:$0xf]
  %v37 = vld [vmem:[%s1 + $0x8] sm:$0xf]
  %v38 = vld [vmem:[%s1 + $0xc] sm:$0xf]
  %v41 = vunpack.c.l.b16 %v33
  %v42 = vunpack.c.l.b16 %v34
  %v43 = vpack.c.b16 %v42, %v41
  %v48 = vunpack.c.l.b16 %v35
  %v49 = vunpack.c.l.b16 %v36
  %v50 = vunpack.c.l.b16 %v37
  %v51 = vunpack.c.l.b16 %v38
  %v52 = vpack.c.b16 %v49, %v48
  %v53 = vpack.c.b16 %v51, %v50
  %vm56 = vcmask 261120
  %v58 = vsel %vm56, %v43, 0
  %60 = vmatpush.bf16.msra.mxu0 0
  %61 = vmatpush.bf16.msra.mxu0 0
  %62 = vmatpush.bf16.msra.mxu0 0
  %63 = vmatpush.bf16.msra.mxu0 0
  %64 = vmatpush.bf16.msra.mxu0 0
  %65 = vmatpush.bf16.msra.mxu0 0
  %66 = vmatpush.bf16.msra.mxu0 %v53
  %67 = vmatpush.bf16.msra.mxu0 %v52
  %68 = vmatmul.bf16.gmra.mxu0 %v58
  %v69 = vpop.f32.mrf.mxu0
  %v70 = vadd.f32 0.0, %v69
  %v71 = vpop.f32.mrf.mxu0
  %v72 = vadd.f32 0.0, %v71
  %73 = vdwg.mxu0
  %v74 = vadd.f32 %v31, %v70
  %v75 = vadd.f32 %v32, %v72
  %76 = vst.msk [vmem:[#allocation2] sm:$0xff] %vm56, %v74
  %77 = vst.msk [vmem:[#allocation2 + $0x8] sm:$0xff] %vm56, %v75
  // Predicated region
  $region30: #{text_encoder_forward.15} parent=0 // pred_check
    %p78 = pneg %p24
  $region31: #{text_encoder_forward.15} parent=0 // pred_check_branch
    %80 = sbr.rel (%p78) target = $region33
  $region32: #{text_encoder_forward.15} parent=0 // pred_region
    %v81 = vld [vmem:[#allocation2] sm:$0xff]
    %v82 = vld [vmem:[#allocation2 + $0x8] sm:$0xff]
    %v83 = vld [vmem:[%s2] sm:$0x1]
    %v85 = vperm.slane %v83, 0
    %v87 = vadd.f32 %v81, %v85
    %v88 = vadd.f32 %v82, %v85
    %v89 = vld [vmem:[%s3] sm:$0xf]
    %v90 = vld [vmem:[%s3 + $0x4] sm:$0xf]
    %v91 = vunpack.c.l.bf16 %v89
    %v92 = vunpack.c.l.bf16 %v90
    %v93 = vadd.f32 %v87, %v91
    %v94 = vadd.f32 %v88, %v92
    %v95 = vsel %vm56, %v93, 0.0
    %96 = vadd.xlane.f32.xlu0 %v95
    %v97 = vpop.xlane.xlu0 %96
    %v98 = vsel %vm56, %v94, 0.0
    %99 = vadd.xlane.f32.xlu0 %v98
    %v100 = vpop.xlane.xlu0 %99
    %v101 = vrcp.pop 32.0
    %v102 = vmul.f32 32.0, %v101
    %v103 = vsub.f32 1.0, %v102
    %v104 = vmul.f32 %v101, %v103
    %v105 = vadd.f32 %v101, %v104
    %vm106 = vweird.f32 %v101
    %v107 = vsel %vm106, %v101, %v105
    %v108 = vmul.f32 %v97, %v107
    %v109 = vmul.f32 %v100, %v107
    %v110 = vmul.f32 %v93, %v93
    %v111 = vmul.f32 %v94, %v94
    %v112 = vsel %vm56, %v110, 0.0
    %113 = vadd.xlane.f32.xlu0 %v112
    %v114 = vpop.xlane.xlu0 %113
    %v115 = vsel %vm56, %v111, 0.0
    %116 = vadd.xlane.f32.xlu0 %v115
    %v117 = vpop.xlane.xlu0 %116
    %v118 = vmul.f32 %v114, %v107
    %v119 = vmul.f32 %v117, %v107
    %v120 = vmul.f32 %v108, %v108
    %v121 = vmul.f32 %v109, %v109
    %v122 = vsub.f32 %v118, %v120
    %v123 = vsub.f32 %v119, %v121
    %v124 = vmax.f32 %v122, 0.0
    %v125 = vmax.f32 %v123, 0.0
    %v126 = vsub.f32 %v93, %v108
    %v127 = vsub.f32 %v94, %v109
    %v128 = vadd.f32 %v124, 1e-12
    %v129 = vadd.f32 %v125, 1e-12
    %v130 = vrsqrt.pop %v128
    %v131 = vmul.f32 %v130, %v128
    %v132 = vmul.f32 %v131, %v130
    %v133 = vmul.f32 0.5, %v132
    %v134 = vsub.f32 1.5, %v133
    %v135 = vmul.f32 %v130, %v134
    %vm136 = vweird.f32 %v128
    %vm137 = vweird.f32 %v130
    %vm138 = vmor %vm136, %vm137
    %v139 = vsel %vm138, %v130, %v135
    %v140 = vrsqrt.pop %v129
    %v141 = vmul.f32 %v140, %v129
    %v142 = vmul.f32 %v141, %v140
    %v143 = vmul.f32 0.5, %v142
    %v144 = vsub.f32 1.5, %v143
    %v145 = vmul.f32 %v140, %v144
    %vm146 = vweird.f32 %v129
    %vm147 = vweird.f32 %v140
    %vm148 = vmor %vm146, %vm147
    %v149 = vsel %vm148, %v140, %v145
    %v150 = vmul.f32 %v126, %v139
    %v151 = vmul.f32 %v127, %v149
    %v152 = vld [vmem:[%s4] sm:$0x1]
    %v154 = vperm.slane %v152, 0
    %v156 = vmul.f32 %v150, %v154
    %v157 = vmul.f32 %v151, %v154
    %v158 = vld [vmem:[%s5] sm:$0x1]
    %v160 = vperm.slane %v158, 0
    %v162 = vadd.f32 %v156, %v160
    %v163 = vadd.f32 %v157, %v160
    %v164 = vpack.c.bf16 %v162, %v162
    %v165 = vpack.c.bf16 %v163, %v163
    %vm166 = vcmask 257024
    %167 = vst.msk [vmem:[%s6] sm:$0xf] %vm166, %v164
    %168 = vst.msk [vmem:[%s6 + $0x4] sm:$0xf] %vm166, %v165
  $region33: #{text_encoder_forward.15} parent=0 // pred_fallthru
    _
  // Predicated region
  $region34: #{text_encoder_forward.15} parent=0 // pred_check
    _
  $region35: #{text_encoder_forward.15} parent=0 // pred_check_branch
    %170 = sbr.rel (0) target = $region37
  $region36: #{text_encoder_forward.15} parent=0 // pred_region
    _
  $region37: #{text_encoder_forward.15} parent=0 // pred_fallthru
    _
  // Predicated region
  $region38: #{text_encoder_forward.15} parent=0 // pred_check
    _
  $region39: #{text_encoder_forward.15} parent=0 // pred_check_branch
    %172 = sbr.rel (0) target = $region41
  $region40: #{text_encoder_forward.15} parent=0 // pred_region
    _
  $region41: #{text_encoder_forward.15} parent=0 // pred_fallthru
    _

// kernel: text_encoder_forward.16
$region0: #{text_encoder_forward.16}
  #allocation0 [shape = 'u32[]', space=smem, size = 0x4, offset = 0x4, fixed_abs, tag = 'smem constant byte address 0x4 - core index']
  #allocation1 [shape = 'u32[72,128]{1,0:T(1,128)}', space=vmem, size = 0x9000, scoped, tag = 'internal scratch']
  #allocation2 [shape = 'f32[16,64]{1,0:T(8,128)}', space=vmem, size = 0x2000, scoped, tag = 'scratch operand']
  %s0 = inlined_call_operand.vmem [shape: bf16[16,32], index: 0, kind: input, shape index: {}]
  %s1 = inlined_call_operand.vmem [shape: bf16[32,64], index: 1, kind: input, shape index: {}]
  %s2 = inlined_call_operand.vmem [shape: f32[1,64], index: 2, kind: input, shape index: {}]
  %s3 = inlined_call_operand.vmem [shape: bf16[16,64], index: 3, kind: output, shape index: {}]
  %s4 = sld [smem:[#allocation0]]
  $region30: #{text_encoder_forward.16} parent=0
    _
  %s6 = ssub.s32 1, %s4
  %s7 = scalar_select 0, %s6, %s4
  // Predicated region
  $region2: #{text_encoder_forward.16} parent=0 // pred_check
    _
  $region3: #{text_encoder_forward.16} parent=0 // pred_check_branch
    %9 = sbr.rel (0) target = $region5
  $region4: #{text_encoder_forward.16} parent=0 // pred_region
    _
  $region5: #{text_encoder_forward.16} parent=0 // pred_fallthru
    _
  // Predicated region
  $region6: #{text_encoder_forward.16} parent=0 // pred_check
    _
  $region7: #{text_encoder_forward.16} parent=0 // pred_check_branch
    %11 = sbr.rel (0) target = $region9
  $region8: #{text_encoder_forward.16} parent=0 // pred_region
    _
  $region9: #{text_encoder_forward.16} parent=0 // pred_fallthru
    _
  // Predicated region
  $region10: #{text_encoder_forward.16} parent=0 // pred_check
    _
  $region11: #{text_encoder_forward.16} parent=0 // pred_check_branch
    %13 = sbr.rel (0) target = $region13
  $region12: #{text_encoder_forward.16} parent=0 // pred_region
    _
  $region13: #{text_encoder_forward.16} parent=0 // pred_fallthru
    _
  %p15 = scmp.eq.s32.totalorder 0, 0
  // Predicated region
  $region14: #{text_encoder_forward.16} parent=0 // pred_check
    %p16 = pneg %p15
  $region15: #{text_encoder_forward.16} parent=0 // pred_check_branch
    %18 = sbr.rel (%p16) target = $region17
  $region16: #{text_encoder_forward.16} parent=0 // pred_region
    %vm19 = vcmask 523264
    %20 = vst.msk [vmem:[#allocation2] sm:$0xff] %vm19, 0.0
    %21 = vst.msk [vmem:[#allocation2 + $0x8] sm:$0xff] %vm19, 0.0
  $region17: #{text_encoder_forward.16} parent=0 // pred_fallthru
    _
  %v22 = vld [vmem:[#allocation2] sm:$0xff]
  %v23 = vld [vmem:[#allocation2 + $0x8] sm:$0xff]
  %v24 = vld [vmem:[%s0] sm:$0xf]
  %v25 = vld [vmem:[%s0 + $0x4] sm:$0xf]
  %v26 = vld [vmem:[%s1] sm:$0xf]
  %v27 = vld [vmem:[%s1 + $0x4] sm:$0xf]
  %v28 = vld [vmem:[%s1 + $0x8] sm:$0xf]
  %v29 = vld [vmem:[%s1 + $0xc] sm:$0xf]
  %v32 = vunpack.c.l.b16 %v24
  %v33 = vunpack.c.l.b16 %v25
  %v34 = vpack.c.b16 %v33, %v32
  %v39 = vunpack.c.l.b16 %v26
  %v40 = vunpack.c.l.b16 %v27
  %v41 = vunpack.c.l.b16 %v28
  %v42 = vunpack.c.l.b16 %v29
  %v43 = vpack.c.b16 %v40, %v39
  %v44 = vpack.c.b16 %v42, %v41
  %vm47 = vcmask 261120
  %v49 = vsel %vm47, %v34, 0
  %51 = vmatpush.bf16.msra.mxu0 0
  %52 = vmatpush.bf16.msra.mxu0 0
  %53 = vmatpush.bf16.msra.mxu0 0
  %54 = vmatpush.bf16.msra.mxu0 0
  %55 = vmatpush.bf16.msra.mxu0 0
  %56 = vmatpush.bf16.msra.mxu0 0
  %57 = vmatpush.bf16.msra.mxu0 %v44
  %58 = vmatpush.bf16.msra.mxu0 %v43
  %59 = vmatmul.bf16.gmra.mxu0 %v49
  %v60 = vpop.f32.mrf.mxu0
  %v61 = vadd.f32 0.0, %v60
  %v62 = vpop.f32.mrf.mxu0
  %v63 = vadd.f32 0.0, %v62
  %64 = vdwg.mxu0
  %v65 = vadd.f32 %v22, %v61
  %v66 = vadd.f32 %v23, %v63
  %vm67 = vcmask 523264
  %68 = vst.msk [vmem:[#allocation2] sm:$0xff] %vm67, %v65
  %69 = vst.msk [vmem:[#allocation2 + $0x8] sm:$0xff] %vm67, %v66
  // Predicated region
  $region18: #{text_encoder_forward.16} parent=0 // pred_check
    %p70 = pneg %p15
  $region19: #{text_encoder_forward.16} parent=0 // pred_check_branch
    %72 = sbr.rel (%p70) target = $region21
  $region20: #{text_encoder_forward.16} parent=0 // pred_region
    %v73 = vld [vmem:[#allocation2] sm:$0xff]
    %v74 = vld [vmem:[#allocation2 + $0x8] sm:$0xff]
    %v75 = vld [vmem:[%s2] sm:$0x1]
    %v77 = vperm.slane %v75, 0
    %v79 = vadd.f32 %v73, %v77
    %v80 = vadd.f32 %v74, %v77
    %v81 = vmul.f32 %v79, %v79
    %v82 = vmul.f32 %v80, %v80
    %v83 = vmul.f32 %v79, %v81
    %v84 = vmul.f32 %v80, %v82
    %v85 = vmul.f32 %v83, 0.044715
    %v86 = vmul.f32 %v84, 0.044715
    %v87 = vadd.f32 %v79, %v85
    %v88 = vadd.f32 %v80, %v86
    %v89 = vmul.f32 %v87, 0.7978846
    %v90 = vmul.f32 %v88, 0.7978846
    %v91 = vtanh.pop %v89
    %v92 = vtanh.pop %v90
    %v93 = vadd.f32 %v91, 1.0
    %v94 = vadd.f32 %v92, 1.0
    %v95 = vmul.f32 %v93, 0.5
    %v96 = vmul.f32 %v94, 0.5
    %v97 = vmul.f32 %v79, %v95
    %v98 = vmul.f32 %v80, %v96
    %v99 = vpack.c.bf16 %v97, %v97
    %v100 = vpack.c.bf16 %v98, %v98
    %vm101 = vcmask 519168
    %102 = vst.msk [vmem:[%s3] sm:$0xf] %vm101, %v99
    %103 = vst.msk [vmem:[%s3 + $0x4] sm:$0xf] %vm101, %v100
  $region21: #{text_encoder_forward.16} parent=0 // pred_fallthru
    _
  // Predicated region
  $region22: #{text_encoder_forward.16} parent=0 // pred_check
    _
  $region23: #{text_encoder_forward.16} parent=0 // pred_check_branch
    %105 = sbr.rel (0) target = $region25
  $region24: #{text_encoder_forward.16} parent=0 // pred_region
    _
  $region25: #{text_encoder_forward.16} parent=0 // pred_fallthru
    _
  // Predicated region
  $region26: #{text_encoder_forward.16} parent=0 // pred_check
    _
  $region27: #{text_encoder_forward.16} parent=0 // pred_check_branch
    %107 = sbr.rel (0) target = $region29
  $region28: #{text_encoder_forward.16} parent=0 // pred_region
    _
  $region29: #{text_encoder_forward.16} parent=0 // pred_fallthru
    _

// kernel: text_encoder_forward.17
$region0: #{text_encoder_forward.17}
  #allocation0 [shape = 'u32[]', space=smem, size = 0x4, offset = 0x4, fixed_abs, tag = 'smem constant byte address 0x4 - core index']
  #allocation1 [shape = 'u32[72,128]{1,0:T(1,128)}', space=vmem, size = 0x9000, scoped, tag = 'internal scratch']
  #allocation2 [shape = 'f32[16,32]{1,0:T(8,128)}', space=vmem, size = 0x2000, scoped, tag = 'scratch operand']
  %s0 = inlined_call_operand.vmem [shape: bf16[16,64], index: 0, kind: input, shape index: {}]
  %s1 = inlined_call_operand.vmem [shape: bf16[64,32], index: 1, kind: input, shape index: {}]
  %s2 = inlined_call_operand.vmem [shape: f32[1,32], index: 2, kind: input, shape index: {}]
  %s3 = inlined_call_operand.vmem [shape: bf16[16,32], index: 3, kind: input, shape index: {}]
  %s4 = inlined_call_operand.vmem [shape: f32[1,32], index: 4, kind: input, shape index: {}]
  %s5 = inlined_call_operand.vmem [shape: f32[1,32], index: 5, kind: input, shape index: {}]
  %s6 = inlined_call_operand.vmem [shape: bf16[16,32], index: 6, kind: output, shape index: {}]
  %s7 = sld [smem:[#allocation0]]
  $region42: #{text_encoder_forward.17} parent=0
    _
  %s9 = ssub.s32 1, %s7
  %s10 = scalar_select 0, %s9, %s7
  // Predicated region
  $region2: #{text_encoder_forward.17} parent=0 // pred_check
    _
  $region3: #{text_encoder_forward.17} parent=0 // pred_check_branch
    %12 = sbr.rel (0) target = $region5
  $region4: #{text_encoder_forward.17} parent=0 // pred_region
    _
  $region5: #{text_encoder_forward.17} parent=0 // pred_fallthru
    _
  // Predicated region
  $region6: #{text_encoder_forward.17} parent=0 // pred_check
    _
  $region7: #{text_encoder_forward.17} parent=0 // pred_check_branch
    %14 = sbr.rel (0) target = $region9
  $region8: #{text_encoder_forward.17} parent=0 // pred_region
    _
  $region9: #{text_encoder_forward.17} parent=0 // pred_fallthru
    _
  // Predicated region
  $region10: #{text_encoder_forward.17} parent=0 // pred_check
    _
  $region11: #{text_encoder_forward.17} parent=0 // pred_check_branch
    %16 = sbr.rel (0) target = $region13
  $region12: #{text_encoder_forward.17} parent=0 // pred_region
    _
  $region13: #{text_encoder_forward.17} parent=0 // pred_fallthru
    _
  // Predicated region
  $region14: #{text_encoder_forward.17} parent=0 // pred_check
    _
  $region15: #{text_encoder_forward.17} parent=0 // pred_check_branch
    %18 = sbr.rel (0) target = $region17
  $region16: #{text_encoder_forward.17} parent=0 // pred_region
    _
  $region17: #{text_encoder_forward.17} parent=0 // pred_fallthru
    _
  // Predicated region
  $region18: #{text_encoder_forward.17} parent=0 // pred_check
    _
  $region19: #{text_encoder_forward.17} parent=0 // pred_check_branch
    %20 = sbr.rel (0) target = $region21
  $region20: #{text_encoder_forward.17} parent=0 // pred_region
    _
  $region21: #{text_encoder_forward.17} parent=0 // pred_fallthru
    _
  // Predicated region
  $region22: #{text_encoder_forward.17} parent=0 // pred_check
    _
  $region23: #{text_encoder_forward.17} parent=0 // pred_check_branch
    %22 = sbr.rel (0) target = $region25
  $region24: #{text_encoder_forward.17} parent=0 // pred_region
    _
  $region25: #{text_encoder_forward.17} parent=0 // pred_fallthru
    _
  %p24 = scmp.eq.s32.totalorder 0, 0
  // Predicated region
  $region26: #{text_encoder_forward.17} parent=0 // pred_check
    %p25 = pneg %p24
  $region27: #{text_encoder_forward.17} parent=0 // pred_check_branch
    %27 = sbr.rel (%p25) target = $region29
  $region28: #{text_encoder_forward.17} parent=0 // pred_region
    %vm28 = vcmask 261120
    %29 = vst.msk [vmem:[#allocation2] sm:$0xff] %vm28, 0.0
    %30 = vst.msk [vmem:[#allocation2 + $0x8] sm:$0xff] %vm28, 0.0
  $region29: #{text_encoder_forward.17} parent=0 // pred_fallthru
    _
  %v31 = vld [vmem:[#allocation2] sm:$0xff]
  %v32 = vld [vmem:[#allocation2 + $0x8] sm:$0xff]
  %v33 = vld [vmem:[%s0] sm:$0xf]
  %v34 = vld [vmem:[%s0 + $0x4] sm:$0xf]
  %v35 = vld [vmem:[%s1] sm:$0xf]
  %v36 = vld [vmem:[%s1 + $0x4] sm:$0xf]
  %v37 = vld [vmem:[%s1 + $0x8] sm:$0xf]
  %v38 = vld [vmem:[%s1 + $0xc] sm:$0xf]
  %v39 = vld [vmem:[%s1 + $0x10] sm:$0xf]
  %v40 = vld [vmem:[%s1 + $0x14] sm:$0xf]
  %v41 = vld [vmem:[%s1 + $0x18] sm:$0xf]
  %v42 = vld [vmem:[%s1 + $0x1c] sm:$0xf]
  %v45 = vunpack.c.l.b16 %v33
  %v46 = vunpack.c.l.b16 %v34
  %v47 = vpack.c.b16 %v46, %v45
  %v56 = vunpack.c.l.b16 %v35
  %v57 = vunpack.c.l.b16 %v36
  %v58 = vunpack.c.l.b16 %v37
  %v59 = vunpack.c.l.b16 %v38
  %v60 = vunpack.c.l.b16 %v39
  %v61 = vunpack.c.l.b16 %v40
  %v62 = vunpack.c.l.b16 %v41
  %v63 = vunpack.c.l.b16 %v42
  %v64 = vpack.c.b16 %v57, %v56
  %v65 = vpack.c.b16 %v59, %v58
  %v66 = vpack.c.b16 %v61, %v60
  %v67 = vpack.c.b16 %v63, %v62
  %vm72 = vcmask 523264
  %v74 = vsel %vm72, %v47, 0
  %76 = vmatpush.bf16.msra.mxu0 0
  %77 = vmatpush.bf16.msra.mxu0 0
  %78 = vmatpush.bf16.msra.mxu0 0
  %79 = vmatpush.bf16.msra.mxu0 0
  %80 = vmatpush.bf16.msra.mxu0 %v67
  %81 = vmatpush.bf16.msra.mxu0 %v66
  %82 = vmatpush.bf16.msra.mxu0 %v65
  %83 = vmatpush.bf16.msra.mxu0 %v64
  %84 = vmatmul.bf16.gmra.mxu0 %v74
  %v85 = vpop.f32.mrf.mxu0
  %v86 = vadd.f32 0.0, %v85
  %v87 = vpop.f32.mrf.mxu0
  %v88 = vadd.f32 0.0, %v87
  %89 = vdwg.mxu0
  %v90 = vadd.f32 %v31, %v86
  %v91 = vadd.f32 %v32, %v88
  %vm92 = vcmask 261120
  %93 = vst.msk [vmem:[#allocation2] sm:$0xff] %vm92, %v90
  %94 = vst.msk [vmem:[#allocation2 + $0x8] sm:$0xff] %vm92, %v91
  // Predicated region
  $region30: #{text_encoder_forward.17} parent=0 // pred_check
    %p95 = pneg %p24
  $region31: #{text_encoder_forward.17} parent=0 // pred_check_branch
    %97 = sbr.rel (%p95) target = $region33
  $region32: #{text_encoder_forward.17} parent=0 // pred_region
    %v98 = vld [vmem:[#allocation2] sm:$0xff]
    %v99 = vld [vmem:[#allocation2 + $0x8] sm:$0xff]
    %v100 = vld [vmem:[%s2] sm:$0x1]
    %v102 = vperm.slane %v100, 0
    %v104 = vadd.f32 %v98, %v102
    %v105 = vadd.f32 %v99, %v102
    %v106 = vld [vmem:[%s3] sm:$0xf]
    %v107 = vld [vmem:[%s3 + $0x4] sm:$0xf]
    %v108 = vunpack.c.l.bf16 %v106
    %v109 = vunpack.c.l.bf16 %v107
    %v110 = vadd.f32 %v104, %v108
    %v111 = vadd.f32 %v105, %v109
    %v112 = vsel %vm92, %v110, 0.0
    %113 = vadd.xlane.f32.xlu0 %v112
    %v114 = vpop.xlane.xlu0 %113
    %v115 = vsel %vm92, %v111, 0.0
    %116 = vadd.xlane.f32.xlu0 %v115
    %v117 = vpop.xlane.xlu0 %116
    %v118 = vrcp.pop 32.0
    %v119 = vmul.f32 32.0, %v118
    %v120 = vsub.f32 1.0, %v119
    %v121 = vmul.f32 %v118, %v120
    %v122 = vadd.f32 %v118, %v121
    %vm123 = vweird.f32 %v118
    %v124 = vsel %vm123, %v118, %v122
    %v125 = vmul.f32 %v114, %v124
    %v126 = vmul.f32 %v117, %v124
    %v127 = vmul.f32 %v110, %v110
    %v128 = vmul.f32 %v111, %v111
    %v129 = vsel %vm92, %v127, 0.0
    %130 = vadd.xlane.f32.xlu0 %v129
    %v131 = vpop.xlane.xlu0 %130
    %v132 = vsel %vm92, %v128, 0.0
    %133 = vadd.xlane.f32.xlu0 %v132
    %v134 = vpop.xlane.xlu0 %133
    %v135 = vmul.f32 %v131, %v124
    %v136 = vmul.f32 %v134, %v124
    %v137 = vmul.f32 %v125, %v125
    %v138 = vmul.f32 %v126, %v126
    %v139 = vsub.f32 %v135, %v137
    %v140 = vsub.f32 %v136, %v138
    %v141 = vmax.f32 %v139, 0.0
    %v142 = vmax.f32 %v140, 0.0
    %v143 = vsub.f32 %v110, %v125
    %v144 = vsub.f32 %v111, %v126
    %v145 = vadd.f32 %v141, 1e-12
    %v146 = vadd.f32 %v142, 1e-12
    %v147 = vrsqrt.pop %v145
    %v148 = vmul.f32 %v147, %v145
    %v149 = vmul.f32 %v148, %v147
    %v150 = vmul.f32 0.5, %v149
    %v151 = vsub.f32 1.5, %v150
    %v152 = vmul.f32 %v147, %v151
    %vm153 = vweird.f32 %v145
    %vm154 = vweird.f32 %v147
    %vm155 = vmor %vm153, %vm154
    %v156 = vsel %vm155, %v147, %v152
    %v157 = vrsqrt.pop %v146
    %v158 = vmul.f32 %v157, %v146
    %v159 = vmul.f32 %v158, %v157
    %v160 = vmul.f32 0.5, %v159
    %v161 = vsub.f32 1.5, %v160
    %v162 = vmul.f32 %v157, %v161
    %vm163 = vweird.f32 %v146
    %vm164 = vweird.f32 %v157
    %vm165 = vmor %vm163, %vm164
    %v166 = vsel %vm165, %v157, %v162
    %v167 = vmul.f32 %v143, %v156
    %v168 = vmul.f32 %v144, %v166
    %v169 = vld [vmem:[%s4] sm:$0x1]
    %v171 = vperm.slane %v169, 0
    %v173 = vmul.f32 %v167, %v171
    %v174 = vmul.f32 %v168, %v171
    %v175 = vld [vmem:[%s5] sm:$0x1]
    %v177 = vperm.slane %v175, 0
    %v179 = vadd.f32 %v173, %v177
    %v180 = vadd.f32 %v174, %v177
    %v181 = vpack.c.bf16 %v179, %v179
    %v182 = vpack.c.bf16 %v180, %v180
    %vm183 = vcmask 257024
    %184 = vst.msk [vmem:[%s6] sm:$0xf] %vm183, %v181
    %185 = vst.msk [vmem:[%s6 + $0x4] sm:$0xf] %vm183, %v182
  $region33: #{text_encoder_forward.17} parent=0 // pred_fallthru
    _
  // Predicated region
  $region34: #{text_encoder_forward.17} parent=0 // pred_check
    _
  $region35: #{text_encoder_forward.17} parent=0 // pred_check_branch
    %187 = sbr.rel (0) target = $region37
  $region36: #{text_encoder_forward.17} parent=0 // pred_region
    _
  $region37: #{text_encoder_forward.17} parent=0 // pred_fallthru
    _
  // Predicated region
  $region38: #{text_encoder_forward.17} parent=0 // pred_check
    _
  $region39: #{text_encoder_forward.17} parent=0 // pred_check_branch
    %189 = sbr.rel (0) target = $region41
  $region40: #{text_encoder_forward.17} parent=0 // pred_region
    _
  $region41: #{text_encoder_forward.17} parent=0 // pred_fallthru
    _

// kernel: text_encoder_forward.23
$region0: #{text_encoder_forward.23}
  #allocation0 [shape = 'u32[]', space=smem, size = 0x4, offset = 0x4, fixed_abs, tag = 'smem constant byte address 0x4 - core index']
  #allocation1 [shape = 'u32[72,128]{1,0:T(1,128)}', space=vmem, size = 0x9000, scoped, tag = 'internal scratch']
  #allocation2 [shape = 'f32[2,128]{1,0:T(2,128)}', space=vmem, size = 0x400, scoped, tag = 'scratch operand']
  %s0 = inlined_call_operand.vmem [shape: bf16[2,32], index: 0, kind: input, shape index: {}]
  %s1 = inlined_call_operand.vmem [shape: bf16[32,128], index: 1, kind: input, shape index: {}]
  %s2 = inlined_call_operand.vmem [shape: f32[1,128], index: 2, kind: input, shape index: {}]
  %s3 = inlined_call_operand.vmem [shape: f32[1,128], index: 3, kind: input, shape index: {}]
  %s4 = inlined_call_operand.vmem [shape: f32[1,128], index: 4, kind: input, shape index: {}]
  %s5 = inlined_call_operand.hbm [shape: f32[2,128], index: 5, kind: output, shape index: {}]
  %s6 = sld [smem:[#allocation0]]
  $region38: #{text_encoder_forward.23} parent=0
    _
  %s8 = ssub.s32 1, %s6
  %s9 = scalar_select 0, %s8, %s6
  $region1: #{text_encoder_forward.23} parent=0
    #allocation3 [shape = 'u8[1024]{0}', space=vmem, size = 0x400, scoped, tag = 'output window, operand 0, single buffered']
    #allocation4 [shape = 's32[1]{0}', space=sflag, size = 0x4, scoped, tag = 'scoped memory for text_encoder_forward.23']
    %10 = vsyncpa [#allocation4], 0
    // Predicated region
    $region2: #{text_encoder_forward.23} parent=1 // pred_check
      _
    $region3: #{text_encoder_forward.23} parent=1 // pred_check_branch
      %12 = sbr.rel (0) target = $region5
    $region4: #{text_encoder_forward.23} parent=1 // pred_region
      _
    $region5: #{text_encoder_forward.23} parent=1 // pred_fallthru
      _
    // Predicated region
    $region6: #{text_encoder_forward.23} parent=1 // pred_check
      _
    $region7: #{text_encoder_forward.23} parent=1 // pred_check_branch
      %14 = sbr.rel (0) target = $region9
    $region8: #{text_encoder_forward.23} parent=1 // pred_region
      _
    $region9: #{text_encoder_forward.23} parent=1 // pred_fallthru
      _
    // Predicated region
    $region10: #{text_encoder_forward.23} parent=1 // pred_check
      _
    $region11: #{text_encoder_forward.23} parent=1 // pred_check_branch
      %16 = sbr.rel (0) target = $region13
    $region12: #{text_encoder_forward.23} parent=1 // pred_region
      _
    $region13: #{text_encoder_forward.23} parent=1 // pred_fallthru
      _
    // Predicated region
    $region14: #{text_encoder_forward.23} parent=1 // pred_check
      _
    $region15: #{text_encoder_forward.23} parent=1 // pred_check_branch
      %18 = sbr.rel (0) target = $region17
    $region16: #{text_encoder_forward.23} parent=1 // pred_region
      _
    $region17: #{text_encoder_forward.23} parent=1 // pred_fallthru
      _
    // Predicated region
    $region18: #{text_encoder_forward.23} parent=1 // pred_check
      _
    $region19: #{text_encoder_forward.23} parent=1 // pred_check_branch
      %20 = sbr.rel (0) target = $region21
    $region20: #{text_encoder_forward.23} parent=1 // pred_region
      _
    $region21: #{text_encoder_forward.23} parent=1 // pred_fallthru
      _
    %p22 = scmp.eq.s32.totalorder 0, 0
    // Predicated region
    $region22: #{text_encoder_forward.23} parent=1 // pred_check
      %p23 = pneg %p22
    $region23: #{text_encoder_forward.23} parent=1 // pred_check_branch
      %25 = sbr.rel (%p23) target = $region25
    $region24: #{text_encoder_forward.23} parent=1 // pred_region
      %26 = vst [vmem:[#allocation2] sm:$0x3] 0.0
    $region25: #{text_encoder_forward.23} parent=1 // pred_fallthru
      _
    %v27 = vld [vmem:[#allocation2] sm:$0x3]
    %v28 = vld [vmem:[%s0] sm:$0x1]
    %v29 = vld [vmem:[%s1] sm:$0xf]
    %v30 = vld [vmem:[%s1 + $0x4] sm:$0xf]
    %v31 = vld [vmem:[%s1 + $0x8] sm:$0xf]
    %v32 = vld [vmem:[%s1 + $0xc] sm:$0xf]
    %v37 = vunpack.c.l.b16 %v29
    %v38 = vunpack.c.l.b16 %v30
    %v39 = vunpack.c.l.b16 %v31
    %v40 = vunpack.c.l.b16 %v32
    %v41 = vpack.c.b16 %v38, %v37
    %v42 = vpack.c.b16 %v40, %v39
    %vm45 = vcmask 261120
    %v47 = vsel %vm45, %v28, 0
    %49 = vmatpush.bf16.msra.mxu0 0
    %50 = vmatpush.bf16.msra.mxu0 0
    %51 = vmatpush.bf16.msra.mxu0 0
    %52 = vmatpush.bf16.msra.mxu0 0
    %53 = vmatpush.bf16.msra.mxu0 0
    %54 = vmatpush.bf16.msra.mxu0 0
    %55 = vmatpush.bf16.msra.mxu0 %v42
    %56 = vmatpush.bf16.msra.mxu0 %v41
    %57 = vmatmul.bf16.gmra.mxu0 %v47
    %v58 = vpop.f32.mrf.mxu0
    %v59 = vadd.f32 0.0, %v58
    %v60 = vpop.f32.mrf.mxu0
    %61 = vdwg.mxu0
    %v62 = vadd.f32 %v27, %v59
    %63 = vst [vmem:[#allocation2] sm:$0x3] %v62
    // Predicated region
    $region26: #{text_encoder_forward.23} parent=1 // pred_check
      %p64 = pneg %p22
    $region27: #{text_encoder_forward.23} parent=1 // pred_check_branch
      %66 = sbr.rel (%p64) target = $region29
    $region28: #{text_encoder_forward.23} parent=1 // pred_region
      %v67 = vld [vmem:[#allocation2] sm:$0x3]
      %v68 = vld [vmem:[%s2] sm:$0x1]
      %v70 = vperm.slane %v68, 0
      %v72 = vadd.f32 %v67, %v70
      %v73 = vlaneseq
      %v74 = vand.u32 %v73, 127
      %vm75 = vcmp.lt.s32.totalorder %v74, 16
      %v76 = vsel %vm75, %v72, 0.0
      %vm77 = vcmask 1041408
      %v78 = vsel %vm77, %v76, 0.0
      %79 = vadd.xlane.f32.xlu0 %v78
      %v80 = vpop.xlane.xlu0 %79
      %v81 = vrcp.pop 16.0
      %v82 = vmul.f32 16.0, %v81
      %v83 = vsub.f32 1.0, %v82
      %v84 = vmul.f32 %v81, %v83
      %v85 = vadd.f32 %v81, %v84
      %vm86 = vweird.f32 %v81
      %v87 = vsel %vm86, %v81, %v85
      %v88 = vmul.f32 %v80, %v87
      %v89 = vmul.f32 %v76, %v76
      %v90 = vsel %vm77, %v89, 0.0
      %91 = vadd.xlane.f32.xlu0 %v90
      %v92 = vpop.xlane.xlu0 %91
      %v93 = vmul.f32 %v92, %v87
      %v94 = vmul.f32 %v88, %v88
      %v95 = vsub.f32 %v93, %v94
      %v96 = vmax.f32 %v95, 0.0
      %v97 = vsub.f32 %v76, %v88
      %v98 = vadd.f32 %v96, 1e-05
      %v99 = vrsqrt.pop %v98
      %v100 = vmul.f32 %v99, %v98
      %v101 = vmul.f32 %v100, %v99
      %v102 = vmul.f32 0.5, %v101
      %v103 = vsub.f32 1.5, %v102
      %v104 = vmul.f32 %v99, %v103
      %vm105 = vweird.f32 %v98
      %vm106 = vweird.f32 %v99
      %vm107 = vmor %vm105, %vm106
      %v108 = vsel %vm107, %v99, %v104
      %v109 = vmul.f32 %v97, %v108
      %v110 = vld [vmem:[%s3] sm:$0x1]
      %v112 = vperm.slane %v110, 0
      %v114 = vmul.f32 %v109, %v112
      %v115 = vld [vmem:[%s4] sm:$0x1]
      %v117 = vperm.slane %v115, 0
      %v119 = vadd.f32 %v114, %v117
      %120 = vst [vmem:[#allocation3] sm:$0x3] %v119
    $region29: #{text_encoder_forward.23} parent=1 // pred_fallthru
      _
    // Predicated region
    $region30: #{text_encoder_forward.23} parent=1 // pred_check
      _
    $region31: #{text_encoder_forward.23} parent=1 // pred_check_branch
      %122 = sbr.rel (0) target = $region33
    $region32: #{text_encoder_forward.23} parent=1 // pred_region
      %124 = vsyncadd [#allocation4], 0
      %s126 = sshll.u32 [#allocation3], 4
      %s127 = int_to_ptr.vmem [resolvable:$true] %s126
      %s128 = sshll.u32 %s5, 4
      %s129 = int_to_ptr.hbm [resolvable:$true] %s128
      %131 = dma.vmem_to_hbm [thread:$0]  %s127, 32, %s129, [#allocation4]
    $region33: #{text_encoder_forward.23} parent=1 // pred_fallthru
      _
    // Predicated region
    $region34: #{text_encoder_forward.23} parent=1 // pred_check
      _
    $region35: #{text_encoder_forward.23} parent=1 // pred_check_branch
      %133 = sbr.rel (0) target = $region37
    $region36: #{text_encoder_forward.23} parent=1 // pred_region
      %135 = dma.done [#allocation4], 32
    $region37: #{text_encoder_forward.23} parent=1 // pred_fallthru
      _
    %136 = vsyncpa [#allocation4], 1

</llo_original>
